<compile_context>
chip_gen: v5e
topology: v5e:2x2
jax: 0.10.0
libtpu: 0.0.40
codegen_flags: <defaults>
</compile_context>

<pallas_src>
import math

import jax
import jax.numpy as jnp
from jax.experimental import pallas as pl
from jax.experimental.pallas import tpu as pltpu


# --------------------------------------------------------------------------------------
# Kernel
# --------------------------------------------------------------------------------------
def _pooling_kernel(x_ref, bias_ref, wf_ref, bf_ref, seg_ref, o_ref):
    # x_ref:    (Bt, S, D)  compute dtype (bf16)  -- batch-blocked sequence tile
    # bias_ref: (Bt, S)     f32                   -- additive key-padding bias (0 / -1e30)
    # wf_ref:   (D, Np)     compute dtype         -- [ Wv | Wk @ qseg | 0-pad ] fused weight
    # bf_ref:   (1, Np)     f32                   -- [ bv | bk @ qseg | 0-pad ] fused bias
    # seg_ref:  (H, D)      f32                   -- seg[h, d] = 1 iff feature d belongs to head h
    # o_ref:    (Bt, D)     out dtype
    Bt, S, D = x_ref.shape
    H = seg_ref.shape[0]

    # One wide MXU matmul with M = Bt*S rows: values and per-head logits together (f32 acc).
    x2 = x_ref[...].reshape(Bt * S, D)
    proj = jnp.dot(x2, wf_ref[...], preferred_element_type=jnp.float32) + bf_ref[...]

    # Values: cast to bf16 immediately (never hold a f32 copy of the largest intermediate).
    v = proj[:, :D].astype(x_ref.dtype).reshape(Bt, S, D)           # (Bt, S, D) bf16

    # Per-head logits, already scaled by 1/sqrt(head_dim) via the host-side fold.
    scores = proj[:, D:D + H].reshape(Bt, S, H)                     # (Bt, S, H) f32
    # Transpose so the sequence sits on the lane axis: softmax/exp become lane-dense.
    # (If the XLU relayout ever becomes the binding slot, switch to softmax over the
    #  sublane S axis + a transposed-LHS dot_general instead.)
    scores = jnp.swapaxes(scores, 1, 2)                             # (Bt, H, S)
    scores = scores + bias_ref[...][:, None, :]                     # additive key-padding mask

    # Softmax over the sequence (lane) axis, in f32; reciprocal on the EUP.
    m = jnp.max(scores, axis=-1, keepdims=True)                     # (Bt, H, 1)
    p = jnp.exp(scores - m)                                         # (Bt, H, S)
    l = jnp.sum(p, axis=-1, keepdims=True)                          # (Bt, H, 1)
    w = (p * pl.reciprocal(l, approx=True)).astype(x_ref.dtype)     # (Bt, H, S) bf16

    # Weighted sum over S on the MXU with bf16 inputs / f32 accumulation.
    out_heads = jnp.einsum('bhs,bsd->bhd', w, v,
                           preferred_element_type=jnp.float32)      # (Bt, H, D) f32
    # Keep only head(d)'s contribution for each feature lane d.
    out = jnp.sum(out_heads * seg_ref[...][None, :, :], axis=1)     # (Bt, D) f32
    o_ref[...] = out.astype(o_ref.dtype)


# --------------------------------------------------------------------------------------
# VMEM-aware tiling heuristics
# --------------------------------------------------------------------------------------
def _tpu_device_kind():
    try:
        dev = jax.devices()[0]
        if dev.platform != "tpu":
            return "unknown"
        return dev.device_kind.lower()
    except Exception:
        return "unknown"


def _vmem_policy():
    """Per-generation tile budget / vmem limit cap / preferred grid-step count."""
    kind = _tpu_device_kind()
    if "7x" in kind or "v7" in kind:
        # v7x: 64 MiB VMEM per TC, 2 TCs share the grid -> smaller tiles, >=4 steps preferred.
        return dict(tile_budget=28 << 20, vmem_cap=56 << 20, want_steps=4)
    if "v6" in kind or "v5" in kind:
        # v5e / v6e: 128 MiB physical VMEM, single TC -> favor the biggest tile that fits.
        return dict(tile_budget=80 << 20, vmem_cap=110 << 20, want_steps=1)
    # Unknown / future chip: stay conservative.
    return dict(tile_budget=28 << 20, vmem_cap=56 << 20, want_steps=2)


def _per_step_vmem_bytes(bt, S, D, H, Np, cdt_bytes):
    # Pipeline buffers (double-buffered by default): x tile, mask bias, output tile.
    pipe = 2 * bt * S * D * cdt_bytes + 2 * bt * S * 4 + 2 * bt * D * 4
    # In-kernel intermediates (worst-case concurrently live).
    inter = (bt * S * Np * 4            # proj (f32 matmul result)
             + bt * S * D * cdt_bytes   # v (bf16)
             + 2 * bt * H * S * 4       # scores + exp copy (f32)
             + bt * H * S * cdt_bytes   # softmax weights (bf16)
             + bt * H * D * 4           # out_heads (f32)
             + bt * D * 4)              # reduced output (f32)
    return pipe + inter


def _fixed_vmem_bytes(D, H, Np, cdt_bytes, weight_bufs):
    return weight_bufs * (D * Np * cdt_bytes + Np * 4 + H * D * 4)


def _pick_batch_block(B, S, D, H, Np, tile_budget, want_steps, cdt_bytes=2):
    """Largest legal batch block whose per-step footprint fits the VMEM budget."""
    fixed = _fixed_vmem_bytes(D, H, Np, cdt_bytes, weight_bufs=2)  # conservative
    cands = sorted({B} | {bt for bt in range(8, B, 8) if B % bt == 0}, reverse=True)
    fitting = [bt for bt in cands
               if fixed + _per_step_vmem_bytes(bt, S, D, H, Np, cdt_bytes) <= tile_budget]
    if not fitting:
        # Even the smallest legal block exceeds the budget (very large S*D).
        # TODO(synk): S-blocked flash-style softmax would be needed here; fall back to
        #             the smallest legal block and let vmem_limit_bytes stretch.
        return cands[-1]
    if want_steps > 1:
        # Prefer >= want_steps grid steps (v7x: 2 TCs x >=2 steps each) as long as the
        # per-step matmul keeps a few hundred rows of M = Bt*S.
        for bt in fitting:  # largest-first
            if B // bt >= want_steps and bt * S >= 256:
                return bt
    return fitting[0]


# --------------------------------------------------------------------------------------
# Host wrapper
# --------------------------------------------------------------------------------------
def _build_pallas_call(B, S, D, H, Np, Bt, out_dtype, vmem_limit, single_buffer_weights):
    const_kwargs = dict(pipeline_mode=pl.Buffered(1)) if single_buffer_weights else {}
    in_specs = [
        pl.BlockSpec((Bt, S, D), lambda b: (b, 0, 0)),            # sequence tile
        pl.BlockSpec((Bt, S), lambda b: (b, 0)),                  # additive key-padding bias
        pl.BlockSpec((D, Np), lambda b: (0, 0), **const_kwargs),  # fused weight (grid-invariant)
        pl.BlockSpec((1, Np), lambda b: (0, 0), **const_kwargs),  # fused bias   (grid-invariant)
        pl.BlockSpec((H, D), lambda b: (0, 0), **const_kwargs),   # head-segment selector
    ]
    return pl.pallas_call(
        _pooling_kernel,
        out_shape=jax.ShapeDtypeStruct((B, D), out_dtype),
        grid=(B // Bt,),
        in_specs=in_specs,
        out_specs=pl.BlockSpec((Bt, D), lambda b: (b, 0)),        # lane-dense output blocks
        compiler_params=pltpu.CompilerParams(
            dimension_semantics=("parallel",),
            vmem_limit_bytes=vmem_limit),
    )


def multi_head_pooling_fast(sequence, key_padding_mask, wk, bk, wv, bv,
                            learned_query, num_heads, *,
                            compute_dtype=jnp.bfloat16, out_dtype=jnp.float32,
                            batch_block=None):
    """sequence: (B, S, D) f32; key_padding_mask: (B, S) bool (True = pad). Returns (B, D).

    Weights are stored pre-transposed as [in_dim, out_dim] so projections are x @ W + b.
    For best performance D should be a multiple of 128 (lane-tile aligned slices / stores).
    """
    B, S, D = sequence.shape
    H = num_heads
    assert D % H == 0, "model_dim must be divisible by head_count!"
    hd = D // H
    cdt_bytes = jnp.dtype(compute_dtype).itemsize

    # Fused-weight N dimension, padded to the next lane-tile multiple (128).
    Np = ((D + H + 127) // 128) * 128

    policy = _vmem_policy()
    if batch_block is None:
        batch_block = _pick_batch_block(B, S, D, H, Np,
                                        policy["tile_budget"], policy["want_steps"],
                                        cdt_bytes=cdt_bytes)
    assert B % batch_block == 0
    Bt = batch_block

    step_bytes = (_fixed_vmem_bytes(D, H, Np, cdt_bytes, weight_bufs=2)
                  + _per_step_vmem_bytes(Bt, S, D, H, Np, cdt_bytes))
    vmem_limit = int(min(policy["vmem_cap"], max(int(step_bytes * 1.3), 32 << 20)))

    # ---------- host-side folding (all in f32) ----------
    seg_dh = (jnp.arange(D)[:, None] // hd == jnp.arange(H)[None, :]).astype(jnp.float32)  # (D, H)
    qseg = seg_dh * learned_query.reshape(D, 1) / math.sqrt(hd)   # query + 1/sqrt(hd) folded in
    w_score = wk @ qseg                                           # (D, H)
    b_score = bk @ qseg                                           # (H,)
    pad = Np - (D + H)
    w_fused = jnp.concatenate(
        [wv, w_score, jnp.zeros((D, pad), jnp.float32)], axis=1)  # (D, Np)
    b_fused = jnp.concatenate(
        [bv, b_score, jnp.zeros((pad,), jnp.float32)], axis=0).reshape(1, Np)
    seg_hd = seg_dh.T                                             # (H, D)
    # Large finite negative instead of -inf: an all-padded row degrades to a uniform average
    # instead of producing NaN in the softmax.
    bias = jnp.where(key_padding_mask, -1e30, 0.0).astype(jnp.float32)   # (B, S)

    x_c = sequence.astype(compute_dtype)
    wf_c = w_fused.astype(compute_dtype)

    # Prefer single-buffered grid-invariant weights; fall back if pipeline_mode=Buffered(1)
    # is rejected by the installed JAX/Mosaic version (running > optimal buffering).
    try:
        call = _build_pallas_call(B, S, D, H, Np, Bt, out_dtype, vmem_limit,
                                  single_buffer_weights=True)
        out = call(x_c, bias, wf_c, b_fused, seg_hd)
    except Exception:
        call = _build_pallas_call(B, S, D, H, Np, Bt, out_dtype, vmem_limit,
                                  single_buffer_weights=False)
        out = call(x_c, bias, wf_c, b_fused, seg_hd)
    return out


# --------------------------------------------------------------------------------------
# Pure-JAX reference (mirrors the PyTorch module, learned-query branch, no dropout)
# --------------------------------------------------------------------------------------
def _reference(sequence, key_padding_mask, wk, bk, wv, bv, learned_query, num_heads):
    B, S, D = sequence.shape
    hd = D // num_heads
    k = sequence @ wk + bk                                         # (B, S, D)
    v = sequence @ wv + bv
    qh = learned_query.reshape(1, num_heads, 1, hd)                # (1, H, 1, hd)
    kh = k.reshape(B, S, num_heads, hd).transpose(0, 2, 1, 3)      # (B, H, S, hd)
    vh = v.reshape(B, S, num_heads, hd).transpose(0, 2, 1, 3)
    scores = jnp.einsum("xhqd,bhsd->bhqs", qh, kh) / math.sqrt(hd)
    mbias = jnp.where(key_padding_mask, -jnp.inf, 0.0)[:, None, None, :]
    scores = scores + mbias
    w = jax.nn.softmax(scores, axis=-1)
    out = jnp.einsum("bhqs,bhsd->bhqd", w, vh)                     # (B, H, 1, hd)
    return out.reshape(B, D)


if __name__ == "__main__":
    B, S, D, H = 16, 8, 32, 4

    key = jax.random.PRNGKey(0)
    k1, k2, k3, k4, k5, k6 = jax.random.split(key, 6)

    sequence = jax.random.normal(k1, (B, S, D), dtype=jnp.float32)
    # Deterministic key padding: per-row valid lengths 1..S (every row keeps >= 1 position).
    lengths = (jnp.arange(B) % S) + 1
    key_padding_mask = jnp.arange(S)[None, :] >= lengths[:, None]   # (B, S) bool, True = pad

    scale = 1.0 / math.sqrt(D)
    wk = jax.random.normal(k2, (D, D), dtype=jnp.float32) * scale   # stored as [in, out]
    bk = jax.random.normal(k3, (D,), dtype=jnp.float32) * 0.1
    wv = jax.random.normal(k4, (D, D), dtype=jnp.float32) * scale
    bv = jax.random.normal(k5, (D,), dtype=jnp.float32) * 0.1
    learned_query = jax.random.normal(k6, (D,), dtype=jnp.float32)  # torch: zeros(D).normal_()

    out = multi_head_pooling_fast(sequence, key_padding_mask, wk, bk, wv, bv,
                                  learned_query, H)
    out = jax.block_until_ready(out)

    ref = _reference(sequence, key_padding_mask, wk, bk, wv, bv, learned_query, H)
    assert out.shape == (B, D)
    # bf16 matmul inputs (with f32 accumulation) => relaxed tolerance vs. the pure-f32 reference.
    max_err = jnp.max(jnp.abs(out - ref))
    assert jnp.allclose(out, ref, atol=5e-2, rtol=5e-2), f"max err {max_err}"

    print("KERNEL_OK")
</pallas_src>

<mosaic_0001>
module attributes {stable_mosaic.version = 11 : i64} {
  func.func @_pooling_kernel(%arg0: i32, %arg1: memref<16x8x32xbf16, #tpu.memory_space<vmem>>, %arg2: memref<16x8xf32, #tpu.memory_space<vmem>>, %arg3: memref<32x128xbf16, #tpu.memory_space<vmem>>, %arg4: memref<1x128xf32, #tpu.memory_space<vmem>>, %arg5: memref<4x32xf32, #tpu.memory_space<vmem>>, %arg6: memref<16x32xf32, #tpu.memory_space<vmem>>) attributes {dimension_semantics = [#tpu.dimension_semantics<parallel>], iteration_bounds = array<i64: 1>, scalar_prefetch = 0 : i64, scratch_operands = 0 : i64, tpu.core_type = #tpu.core_type<tc>, window_params = [{transform_indices = @transform_0, window_bounds = array<i64: 16, 8, 32>}, {transform_indices = @transform_1, window_bounds = array<i64: 16, 8>}, {pipeline_mode = #tpu.pipeline_mode<synchronous>, transform_indices = @transform_2, window_bounds = array<i64: 32, 128>}, {pipeline_mode = #tpu.pipeline_mode<synchronous>, transform_indices = @transform_3, window_bounds = array<i64: 1, 128>}, {pipeline_mode = #tpu.pipeline_mode<synchronous>, transform_indices = @transform_4, window_bounds = array<i64: 4, 32>}, {transform_indices = @transform_5, window_bounds = array<i64: 16, 32>}]} {
    %c0 = arith.constant 0 : index
    %c0_0 = arith.constant 0 : index
    %c0_1 = arith.constant 0 : index
    %0 = vector.load %arg1[%c0, %c0_0, %c0_1] : memref<16x8x32xbf16, #tpu.memory_space<vmem>>, vector<16x8x32xbf16>
    %1 = vector.shape_cast %0 : vector<16x8x32xbf16> to vector<128x32xbf16>
    %c0_2 = arith.constant 0 : index
    %c0_3 = arith.constant 0 : index
    %2 = vector.load %arg3[%c0_2, %c0_3] : memref<32x128xbf16, #tpu.memory_space<vmem>>, vector<32x128xbf16>
    %cst = arith.constant dense<0.000000e+00> : vector<128x128xf32>
    %3 = tpu.matmul %1, %2, %cst {dimension_numbers = #tpu.dot_dimension_numbers<[1], [0], [0], [1], [0, 0, 1, 1], [], []>} : vector<128x32xbf16>, vector<32x128xbf16>, vector<128x128xf32> -> vector<128x128xf32>
    %c0_4 = arith.constant 0 : index
    %c0_5 = arith.constant 0 : index
    %4 = vector.load %arg4[%c0_4, %c0_5] : memref<1x128xf32, #tpu.memory_space<vmem>>, vector<1x128xf32>
    %5 = vector.broadcast %4 : vector<1x128xf32> to vector<128x128xf32>
    %6 = arith.addf %3, %5 : vector<128x128xf32>
    %7 = vector.extract_strided_slice %6 {offsets = [0, 0], sizes = [128, 32], strides = [1, 1]} : vector<128x128xf32> to vector<128x32xf32>
    %8 = arith.truncf %7 : vector<128x32xf32> to vector<128x32xbf16>
    %9 = vector.shape_cast %8 : vector<128x32xbf16> to vector<16x8x32xbf16>
    %10 = vector.extract_strided_slice %6 {offsets = [0, 32], sizes = [128, 4], strides = [1, 1]} : vector<128x128xf32> to vector<128x4xf32>
    %11 = vector.shape_cast %10 : vector<128x4xf32> to vector<16x8x4xf32>
    %12 = tpu.transpose %11, [0, 2, 1] : vector<16x8x4xf32> -> vector<16x4x8xf32>
    %c0_6 = arith.constant 0 : index
    %c0_7 = arith.constant 0 : index
    %13 = vector.load %arg2[%c0_6, %c0_7] : memref<16x8xf32, #tpu.memory_space<vmem>>, vector<16x8xf32>
    %14 = vector.shape_cast %13 : vector<16x8xf32> to vector<16x1x8xf32>
    %15 = vector.broadcast %14 : vector<16x1x8xf32> to vector<16x4x8xf32>
    %16 = arith.addf %12, %15 : vector<16x4x8xf32>
    %cst_8 = arith.constant dense<0xFF800000> : vector<16x4xf32>
    %17 = vector.multi_reduction <maximumf>, %16, %cst_8 [2] : vector<16x4x8xf32> to vector<16x4xf32>
    %18 = vector.shape_cast %17 : vector<16x4xf32> to vector<16x4x1xf32>
    %19 = vector.broadcast %18 : vector<16x4x1xf32> to vector<16x4x8xf32>
    %20 = arith.subf %16, %19 : vector<16x4x8xf32>
    %21 = math.exp %20 : vector<16x4x8xf32>
    %cst_9 = arith.constant dense<0.000000e+00> : vector<16x4xf32>
    %22 = vector.multi_reduction <add>, %21, %cst_9 [2] : vector<16x4x8xf32> to vector<16x4xf32>
    %23 = vector.shape_cast %22 : vector<16x4xf32> to vector<16x4x1xf32>
    %24 = tpu.reciprocal %23 {approx = true} : vector<16x4x1xf32> -> vector<16x4x1xf32>
    %25 = vector.broadcast %24 : vector<16x4x1xf32> to vector<16x4x8xf32>
    %26 = arith.mulf %21, %25 : vector<16x4x8xf32>
    %27 = arith.truncf %26 : vector<16x4x8xf32> to vector<16x4x8xbf16>
    "tpu.trace_start"() <{level = 10 : i32, message = "bhs,bsd->bhd"}> : () -> ()
    %cst_10 = arith.constant dense<0.000000e+00> : vector<16x4x32xf32>
    %28 = tpu.matmul %27, %9, %cst_10 {dimension_numbers = #tpu.dot_dimension_numbers<[2], [1], [1], [2], [0, 0, 0, 1, 1, 2], [0], [0]>} : vector<16x4x8xbf16>, vector<16x8x32xbf16>, vector<16x4x32xf32> -> vector<16x4x32xf32>
    "tpu.trace_stop"() : () -> ()
    %c0_11 = arith.constant 0 : index
    %c0_12 = arith.constant 0 : index
    %29 = vector.load %arg5[%c0_11, %c0_12] : memref<4x32xf32, #tpu.memory_space<vmem>>, vector<4x32xf32>
    %30 = vector.shape_cast %29 : vector<4x32xf32> to vector<1x4x32xf32>
    %31 = vector.broadcast %30 : vector<1x4x32xf32> to vector<16x4x32xf32>
    %32 = arith.mulf %28, %31 : vector<16x4x32xf32>
    %cst_13 = arith.constant dense<0.000000e+00> : vector<16x32xf32>
    %33 = vector.multi_reduction <add>, %32, %cst_13 [1] : vector<16x4x32xf32> to vector<16x32xf32>
    %c0_14 = arith.constant 0 : index
    %c0_15 = arith.constant 0 : index
    %34 = vector.load %arg6[%c0_14, %c0_15] : memref<16x32xf32, #tpu.memory_space<vmem>>, vector<16x32xf32>
    tpu.vector_store %arg6[%c0_14, %c0_15], %33 {strides = array<i32>} : memref<16x32xf32, #tpu.memory_space<vmem>>, vector<16x32xf32>,
    return
  }
  func.func @transform_0(%arg0: i32) -> (i32, i32, i32) {
    %c0_i32 = arith.constant 0 : i32
    %c0_i32_0 = arith.constant 0 : i32
    %c0_i32_1 = arith.constant 0 : i32
    return %arg0, %c0_i32, %c0_i32_0 : i32, i32, i32
  }
  func.func @transform_1(%arg0: i32) -> (i32, i32) {
    %c0_i32 = arith.constant 0 : i32
    %c0_i32_0 = arith.constant 0 : i32
    return %arg0, %c0_i32 : i32, i32
  }
  func.func @transform_2(%arg0: i32) -> (i32, i32) {
    %c0_i32 = arith.constant 0 : i32
    %c0_i32_0 = arith.constant 0 : i32
    %c0_i32_1 = arith.constant 0 : i32
    return %c0_i32, %c0_i32_0 : i32, i32
  }
  func.func @transform_3(%arg0: i32) -> (i32, i32) {
    %c0_i32 = arith.constant 0 : i32
    %c0_i32_0 = arith.constant 0 : i32
    %c0_i32_1 = arith.constant 0 : i32
    return %c0_i32, %c0_i32_0 : i32, i32
  }
  func.func @transform_4(%arg0: i32) -> (i32, i32) {
    %c0_i32 = arith.constant 0 : i32
    %c0_i32_0 = arith.constant 0 : i32
    %c0_i32_1 = arith.constant 0 : i32
    return %c0_i32, %c0_i32_0 : i32, i32
  }
  func.func @transform_5(%arg0: i32) -> (i32, i32) {
    %c0_i32 = arith.constant 0 : i32
    %c0_i32_0 = arith.constant 0 : i32
    return %arg0, %c0_i32 : i32, i32
  }
}

module attributes {stable_mosaic.version = 11 : i64} {
  func.func @_pooling_kernel(%arg0: i32, %arg1: memref<16x8x32xbf16, #tpu.memory_space<vmem>>, %arg2: memref<16x8xf32, #tpu.memory_space<vmem>>, %arg3: memref<32x128xbf16, #tpu.memory_space<vmem>>, %arg4: memref<1x128xf32, #tpu.memory_space<vmem>>, %arg5: memref<4x32xf32, #tpu.memory_space<vmem>>, %arg6: memref<16x32xf32, #tpu.memory_space<vmem>>) attributes {dimension_semantics = [#tpu.dimension_semantics<parallel>], iteration_bounds = array<i64: 1>, scalar_prefetch = 0 : i64, scratch_operands = 0 : i64, tpu.core_type = #tpu.core_type<tc>, window_params = [{transform_indices = @transform_0, window_bounds = array<i64: 16, 8, 32>}, {transform_indices = @transform_1, window_bounds = array<i64: 16, 8>}, {pipeline_mode = #tpu.pipeline_mode<synchronous>, transform_indices = @transform_2, window_bounds = array<i64: 32, 128>}, {pipeline_mode = #tpu.pipeline_mode<synchronous>, transform_indices = @transform_3, window_bounds = array<i64: 1, 128>}, {pipeline_mode = #tpu.pipeline_mode<synchronous>, transform_indices = @transform_4, window_bounds = array<i64: 4, 32>}, {transform_indices = @transform_5, window_bounds = array<i64: 16, 32>}]} {
    %c0 = arith.constant 0 : index
    %c0_0 = arith.constant 0 : index
    %c0_1 = arith.constant 0 : index
    %0 = vector.load %arg1[%c0, %c0_0, %c0_1] : memref<16x8x32xbf16, #tpu.memory_space<vmem>>, vector<16x8x32xbf16>
    %1 = vector.shape_cast %0 : vector<16x8x32xbf16> to vector<128x32xbf16>
    %c0_2 = arith.constant 0 : index
    %c0_3 = arith.constant 0 : index
    %2 = vector.load %arg3[%c0_2, %c0_3] : memref<32x128xbf16, #tpu.memory_space<vmem>>, vector<32x128xbf16>
    %cst = arith.constant dense<0.000000e+00> : vector<128x128xf32>
    %3 = tpu.matmul %1, %2, %cst {dimension_numbers = #tpu.dot_dimension_numbers<[1], [0], [0], [1], [0, 0, 1, 1], [], []>} : vector<128x32xbf16>, vector<32x128xbf16>, vector<128x128xf32> -> vector<128x128xf32>
    %c0_4 = arith.constant 0 : index
    %c0_5 = arith.constant 0 : index
    %4 = vector.load %arg4[%c0_4, %c0_5] : memref<1x128xf32, #tpu.memory_space<vmem>>, vector<1x128xf32>
    %5 = vector.broadcast %4 : vector<1x128xf32> to vector<128x128xf32>
    %6 = arith.addf %3, %5 : vector<128x128xf32>
    %7 = vector.extract_strided_slice %6 {offsets = [0, 0], sizes = [128, 32], strides = [1, 1]} : vector<128x128xf32> to vector<128x32xf32>
    %8 = arith.truncf %7 : vector<128x32xf32> to vector<128x32xbf16>
    %9 = vector.shape_cast %8 : vector<128x32xbf16> to vector<16x8x32xbf16>
    %10 = vector.extract_strided_slice %6 {offsets = [0, 32], sizes = [128, 4], strides = [1, 1]} : vector<128x128xf32> to vector<128x4xf32>
    %11 = vector.shape_cast %10 : vector<128x4xf32> to vector<16x8x4xf32>
    %12 = tpu.transpose %11, [0, 2, 1] : vector<16x8x4xf32> -> vector<16x4x8xf32>
    %c0_6 = arith.constant 0 : index
    %c0_7 = arith.constant 0 : index
    %13 = vector.load %arg2[%c0_6, %c0_7] : memref<16x8xf32, #tpu.memory_space<vmem>>, vector<16x8xf32>
    %14 = vector.shape_cast %13 : vector<16x8xf32> to vector<16x1x8xf32>
    %15 = vector.broadcast %14 : vector<16x1x8xf32> to vector<16x4x8xf32>
    %16 = arith.addf %12, %15 : vector<16x4x8xf32>
    %cst_8 = arith.constant dense<0xFF800000> : vector<16x4xf32>
    %17 = vector.multi_reduction <maximumf>, %16, %cst_8 [2] : vector<16x4x8xf32> to vector<16x4xf32>
    %18 = vector.shape_cast %17 : vector<16x4xf32> to vector<16x4x1xf32>
    %19 = vector.broadcast %18 : vector<16x4x1xf32> to vector<16x4x8xf32>
    %20 = arith.subf %16, %19 : vector<16x4x8xf32>
    %21 = math.exp %20 : vector<16x4x8xf32>
    %cst_9 = arith.constant dense<0.000000e+00> : vector<16x4xf32>
    %22 = vector.multi_reduction <add>, %21, %cst_9 [2] : vector<16x4x8xf32> to vector<16x4xf32>
    %23 = vector.shape_cast %22 : vector<16x4xf32> to vector<16x4x1xf32>
    %24 = tpu.reciprocal %23 {approx = true} : vector<16x4x1xf32> -> vector<16x4x1xf32>
    %25 = vector.broadcast %24 : vector<16x4x1xf32> to vector<16x4x8xf32>
    %26 = arith.mulf %21, %25 : vector<16x4x8xf32>
    %27 = arith.truncf %26 : vector<16x4x8xf32> to vector<16x4x8xbf16>
    "tpu.trace_start"() <{level = 10 : i32, message = "bhs,bsd->bhd"}> : () -> ()
    %cst_10 = arith.constant dense<0.000000e+00> : vector<16x4x32xf32>
    %28 = tpu.matmul %27, %9, %cst_10 {dimension_numbers = #tpu.dot_dimension_numbers<[2], [1], [1], [2], [0, 0, 0, 1, 1, 2], [0], [0]>} : vector<16x4x8xbf16>, vector<16x8x32xbf16>, vector<16x4x32xf32> -> vector<16x4x32xf32>
    "tpu.trace_stop"() : () -> ()
    %c0_11 = arith.constant 0 : index
    %c0_12 = arith.constant 0 : index
    %29 = vector.load %arg5[%c0_11, %c0_12] : memref<4x32xf32, #tpu.memory_space<vmem>>, vector<4x32xf32>
    %30 = vector.shape_cast %29 : vector<4x32xf32> to vector<1x4x32xf32>
    %31 = vector.broadcast %30 : vector<1x4x32xf32> to vector<16x4x32xf32>
    %32 = arith.mulf %28, %31 : vector<16x4x32xf32>
    %cst_13 = arith.constant dense<0.000000e+00> : vector<16x32xf32>
    %33 = vector.multi_reduction <add>, %32, %cst_13 [1] : vector<16x4x32xf32> to vector<16x32xf32>
    %c0_14 = arith.constant 0 : index
    %c0_15 = arith.constant 0 : index
    %34 = vector.load %arg6[%c0_14, %c0_15] : memref<16x32xf32, #tpu.memory_space<vmem>>, vector<16x32xf32>
    tpu.vector_store %arg6[%c0_14, %c0_15], %33 {strides = array<i32>} : memref<16x32xf32, #tpu.memory_space<vmem>>, vector<16x32xf32>,
    return
  }
  func.func @transform_0(%arg0: i32) -> (i32, i32, i32) {
    %c0_i32 = arith.constant 0 : i32
    %c0_i32_0 = arith.constant 0 : i32
    %c0_i32_1 = arith.constant 0 : i32
    return %arg0, %c0_i32, %c0_i32_0 : i32, i32, i32
  }
  func.func @transform_1(%arg0: i32) -> (i32, i32) {
    %c0_i32 = arith.constant 0 : i32
    %c0_i32_0 = arith.constant 0 : i32
    return %arg0, %c0_i32 : i32, i32
  }
  func.func @transform_2(%arg0: i32) -> (i32, i32) {
    %c0_i32 = arith.constant 0 : i32
    %c0_i32_0 = arith.constant 0 : i32
    %c0_i32_1 = arith.constant 0 : i32
    return %c0_i32, %c0_i32_0 : i32, i32
  }
  func.func @transform_3(%arg0: i32) -> (i32, i32) {
    %c0_i32 = arith.constant 0 : i32
    %c0_i32_0 = arith.constant 0 : i32
    %c0_i32_1 = arith.constant 0 : i32
    return %c0_i32, %c0_i32_0 : i32, i32
  }
  func.func @transform_4(%arg0: i32) -> (i32, i32) {
    %c0_i32 = arith.constant 0 : i32
    %c0_i32_0 = arith.constant 0 : i32
    %c0_i32_1 = arith.constant 0 : i32
    return %c0_i32, %c0_i32_0 : i32, i32
  }
  func.func @transform_5(%arg0: i32) -> (i32, i32) {
    %c0_i32 = arith.constant 0 : i32
    %c0_i32_0 = arith.constant 0 : i32
    return %arg0, %c0_i32 : i32, i32
  }
}

</mosaic_0001>

<llo_original>
// kernel: tpu_custom_call.1
$region0: #{tpu_custom_call.1}
  #allocation0 [shape = 'u32[]', space=smem, size = 0x4, offset = 0x4, fixed_abs, tag = 'smem constant byte address 0x4 - core index']
  #allocation1 [shape = 'u32[72,128]{1,0:T(1,128)}', space=vmem, size = 0x9000, scoped, tag = 'internal scratch']
  %s0 = inlined_call_operand.hbm [shape: bf16[16,8,32], index: 0, kind: input, shape index: {}]
  %s1 = inlined_call_operand.vmem [shape: f32[16,8], index: 1, kind: input, shape index: {}]
  %s2 = inlined_call_operand.vmem [shape: bf16[32,128], index: 2, kind: input, shape index: {}]
  %s3 = inlined_call_operand.vmem [shape: f32[1,128], index: 3, kind: input, shape index: {}]
  %s4 = inlined_call_operand.vmem [shape: f32[4,32], index: 4, kind: input, shape index: {}]
  %s5 = inlined_call_operand.hbm [shape: f32[16,32], index: 5, kind: output, shape index: {}]
  %s6 = sld [smem:[#allocation0]]
  $region34: #{tpu_custom_call.1} parent=0
    _
  %s8 = ssub.s32 1, %s6
  %s9 = scalar_select 0, %s8, %s6
  $region1: #{tpu_custom_call.1} parent=0
    #allocation2 [shape = 'u8[32768]{0}', space=vmem, size = 0x8000, scoped, tag = 'input window, operand 0, single buffered']
    #allocation3 [shape = 's32[1]{0}', space=sflag, size = 0x4, scoped, tag = 'scoped memory for tpu_custom_call.1']
    #allocation4 [shape = 's32[1]{0}', space=sflag, size = 0x4, scoped, tag = 'scoped memory for tpu_custom_call.1']
    #allocation5 [shape = 'u8[8192]{0}', space=vmem, size = 0x2000, scoped, tag = 'output window, operand 0, single buffered']
    %10 = vsyncpa [#allocation3], 0
    %11 = vsyncpa [#allocation4], 0
    // Predicated region
    $region2: #{tpu_custom_call.1} parent=1 // pred_check
      _
    $region3: #{tpu_custom_call.1} parent=1 // pred_check_branch
      %13 = sbr.rel (0) target = $region5
    $region4: #{tpu_custom_call.1} parent=1 // pred_region
      %15 = vsyncadd [#allocation3], 0
      %s16 = sshll.u32 %s0, 4
      %s17 = int_to_ptr.hbm [resolvable:$true] %s16
      %s18 = sshll.u32 [#allocation2], 4
      %s19 = int_to_ptr.vmem [resolvable:$true] %s18
      %24 = dma.hbm_to_vmem [thread:$0]  %s17, 1024, %s19, [#allocation3], 64, 64, 4
    $region5: #{tpu_custom_call.1} parent=1 // pred_fallthru
      _
    // Predicated region
    $region6: #{tpu_custom_call.1} parent=1 // pred_check
      _
    $region7: #{tpu_custom_call.1} parent=1 // pred_check_branch
      %26 = sbr.rel (0) target = $region9
    $region8: #{tpu_custom_call.1} parent=1 // pred_region
      _
    $region9: #{tpu_custom_call.1} parent=1 // pred_fallthru
      _
    // Predicated region
    $region10: #{tpu_custom_call.1} parent=1 // pred_check
      _
    $region11: #{tpu_custom_call.1} parent=1 // pred_check_branch
      %28 = sbr.rel (0) target = $region13
    $region12: #{tpu_custom_call.1} parent=1 // pred_region
      _
    $region13: #{tpu_custom_call.1} parent=1 // pred_fallthru
      _
    // Predicated region
    $region14: #{tpu_custom_call.1} parent=1 // pred_check
      _
    $region15: #{tpu_custom_call.1} parent=1 // pred_check_branch
      %30 = sbr.rel (0) target = $region17
    $region16: #{tpu_custom_call.1} parent=1 // pred_region
      _
    $region17: #{tpu_custom_call.1} parent=1 // pred_fallthru
      _
    // Predicated region
    $region18: #{tpu_custom_call.1} parent=1 // pred_check
      _
    $region19: #{tpu_custom_call.1} parent=1 // pred_check_branch
      %32 = sbr.rel (0) target = $region21
    $region20: #{tpu_custom_call.1} parent=1 // pred_region
      _
    $region21: #{tpu_custom_call.1} parent=1 // pred_fallthru
      _
    // Predicated region
    $region22: #{tpu_custom_call.1} parent=1 // pred_check
      _
    $region23: #{tpu_custom_call.1} parent=1 // pred_check_branch
      %34 = sbr.rel (0) target = $region25
    $region24: #{tpu_custom_call.1} parent=1 // pred_region
      %36 = dma.done [#allocation3], 1024
    $region25: #{tpu_custom_call.1} parent=1 // pred_fallthru
      _
    %v38 = vld [vmem:[#allocation2] sm:$0xf]
    %v39 = vld [vmem:[#allocation2 + $0x4] sm:$0xf]
    %v40 = vld [vmem:[#allocation2 + $0x8] sm:$0xf]
    %v41 = vld [vmem:[#allocation2 + $0xc] sm:$0xf]
    %v42 = vld [vmem:[#allocation2 + $0x10] sm:$0xf]
    %v43 = vld [vmem:[#allocation2 + $0x14] sm:$0xf]
    %v44 = vld [vmem:[#allocation2 + $0x18] sm:$0xf]
    %v45 = vld [vmem:[#allocation2 + $0x1c] sm:$0xf]
    %v46 = vld [vmem:[#allocation2 + $0x20] sm:$0xf]
    %v47 = vld [vmem:[#allocation2 + $0x24] sm:$0xf]
    %v48 = vld [vmem:[#allocation2 + $0x28] sm:$0xf]
    %v49 = vld [vmem:[#allocation2 + $0x2c] sm:$0xf]
    %v50 = vld [vmem:[#allocation2 + $0x30] sm:$0xf]
    %v51 = vld [vmem:[#allocation2 + $0x34] sm:$0xf]
    %v52 = vld [vmem:[#allocation2 + $0x38] sm:$0xf]
    %v53 = vld [vmem:[#allocation2 + $0x3c] sm:$0xf]
    %v54 = vld [vmem:[%s2] sm:$0xf]
    %v55 = vld [vmem:[%s2 + $0x4] sm:$0xf]
    %v56 = vld [vmem:[%s2 + $0x8] sm:$0xf]
    %v57 = vld [vmem:[%s2 + $0xc] sm:$0xf]
    %v58 = vld [vmem:[%s3] sm:$0x1]
    %v60 = vperm.slane %v58, 0
    %v78 = vunpack.c.l.b16 %v38
    %v79 = vunpack.c.l.b16 %v39
    %v80 = vunpack.c.l.b16 %v40
    %v81 = vunpack.c.l.b16 %v41
    %v82 = vunpack.c.l.b16 %v42
    %v83 = vunpack.c.l.b16 %v43
    %v84 = vunpack.c.l.b16 %v44
    %v85 = vunpack.c.l.b16 %v45
    %v86 = vunpack.c.l.b16 %v46
    %v87 = vunpack.c.l.b16 %v47
    %v88 = vunpack.c.l.b16 %v48
    %v89 = vunpack.c.l.b16 %v49
    %v90 = vunpack.c.l.b16 %v50
    %v91 = vunpack.c.l.b16 %v51
    %v92 = vunpack.c.l.b16 %v52
    %v93 = vunpack.c.l.b16 %v53
    %v94 = vpack.c.b16 %v79, %v78
    %v95 = vpack.c.b16 %v81, %v80
    %v96 = vpack.c.b16 %v83, %v82
    %v97 = vpack.c.b16 %v85, %v84
    %v98 = vpack.c.b16 %v87, %v86
    %v99 = vpack.c.b16 %v89, %v88
    %v100 = vpack.c.b16 %v91, %v90
    %v101 = vpack.c.b16 %v93, %v92
    %v106 = vunpack.c.l.b16 %v54
    %v107 = vunpack.c.l.b16 %v55
    %v108 = vunpack.c.l.b16 %v56
    %v109 = vunpack.c.l.b16 %v57
    %v110 = vpack.c.b16 %v107, %v106
    %v111 = vpack.c.b16 %v109, %v108
    %vm114 = vcmask 261120
    %v116 = vsel %vm114, %v94, 0
    %v119 = vsel %vm114, %v95, 0
    %v122 = vsel %vm114, %v96, 0
    %v125 = vsel %vm114, %v97, 0
    %v128 = vsel %vm114, %v98, 0
    %v131 = vsel %vm114, %v99, 0
    %v134 = vsel %vm114, %v100, 0
    %v137 = vsel %vm114, %v101, 0
    %139 = vmatpush.bf16.msra.mxu0 0
    %140 = vmatpush.bf16.msra.mxu0 0
    %141 = vmatpush.bf16.msra.mxu0 0
    %142 = vmatpush.bf16.msra.mxu0 0
    %143 = vmatpush.bf16.msra.mxu0 0
    %144 = vmatpush.bf16.msra.mxu0 0
    %145 = vmatpush.bf16.msra.mxu0 %v111
    %146 = vmatpush.bf16.msra.mxu0 %v110
    %147 = vmatmul.bf16.gmra.mxu0 %v116
    %v148 = vpop.f32.mrf.mxu0
    %v149 = vadd.f32 %v60, %v148
    %v150 = vpop.f32.mrf.mxu0
    %v151 = vadd.f32 %v60, %v150
    %152 = vmatmul.bf16.gmra.mxu0 %v119
    %v153 = vpop.f32.mrf.mxu0
    %v154 = vadd.f32 %v60, %v153
    %v155 = vpop.f32.mrf.mxu0
    %v156 = vadd.f32 %v60, %v155
    %157 = vmatmul.bf16.gmra.mxu0 %v122
    %v158 = vpop.f32.mrf.mxu0
    %v159 = vadd.f32 %v60, %v158
    %v160 = vpop.f32.mrf.mxu0
    %v161 = vadd.f32 %v60, %v160
    %162 = vmatmul.bf16.gmra.mxu0 %v125
    %v163 = vpop.f32.mrf.mxu0
    %v164 = vadd.f32 %v60, %v163
    %v165 = vpop.f32.mrf.mxu0
    %v166 = vadd.f32 %v60, %v165
    %167 = vmatmul.bf16.gmra.mxu0 %v128
    %v168 = vpop.f32.mrf.mxu0
    %v169 = vadd.f32 %v60, %v168
    %v170 = vpop.f32.mrf.mxu0
    %v171 = vadd.f32 %v60, %v170
    %172 = vmatmul.bf16.gmra.mxu0 %v131
    %v173 = vpop.f32.mrf.mxu0
    %v174 = vadd.f32 %v60, %v173
    %v175 = vpop.f32.mrf.mxu0
    %v176 = vadd.f32 %v60, %v175
    %177 = vmatmul.bf16.gmra.mxu0 %v134
    %v178 = vpop.f32.mrf.mxu0
    %v179 = vadd.f32 %v60, %v178
    %v180 = vpop.f32.mrf.mxu0
    %v181 = vadd.f32 %v60, %v180
    %182 = vmatmul.bf16.gmra.mxu0 %v137
    %v183 = vpop.f32.mrf.mxu0
    %v184 = vadd.f32 %v60, %v183
    %v185 = vpop.f32.mrf.mxu0
    %v186 = vadd.f32 %v60, %v185
    %187 = vdwg.mxu0
    %v188 = vpack.c.bf16 %v149, %v149
    %v189 = vpack.c.bf16 %v151, %v151
    %v190 = vpack.c.bf16 %v154, %v154
    %v191 = vpack.c.bf16 %v156, %v156
    %v192 = vpack.c.bf16 %v159, %v159
    %v193 = vpack.c.bf16 %v161, %v161
    %v194 = vpack.c.bf16 %v164, %v164
    %v195 = vpack.c.bf16 %v166, %v166
    %v196 = vpack.c.bf16 %v169, %v169
    %v197 = vpack.c.bf16 %v171, %v171
    %v198 = vpack.c.bf16 %v174, %v174
    %v199 = vpack.c.bf16 %v176, %v176
    %v200 = vpack.c.bf16 %v179, %v179
    %v201 = vpack.c.bf16 %v181, %v181
    %v202 = vpack.c.bf16 %v184, %v184
    %v203 = vpack.c.bf16 %v186, %v186
    %220 = vrot.lane.b32.xlu0 %v149, 96
    %v221 = vpop.permute.xlu0 %220
    %222 = vrot.lane.b32.xlu0 %v151, 96
    %v223 = vpop.permute.xlu0 %222
    %224 = vrot.lane.b32.xlu0 %v154, 96
    %v225 = vpop.permute.xlu0 %224
    %226 = vrot.lane.b32.xlu0 %v156, 96
    %v227 = vpop.permute.xlu0 %226
    %228 = vrot.lane.b32.xlu0 %v159, 96
    %v229 = vpop.permute.xlu0 %228
    %230 = vrot.lane.b32.xlu0 %v161, 96
    %v231 = vpop.permute.xlu0 %230
    %232 = vrot.lane.b32.xlu0 %v164, 96
    %v233 = vpop.permute.xlu0 %232
    %234 = vrot.lane.b32.xlu0 %v166, 96
    %v235 = vpop.permute.xlu0 %234
    %236 = vrot.lane.b32.xlu0 %v169, 96
    %v237 = vpop.permute.xlu0 %236
    %238 = vrot.lane.b32.xlu0 %v171, 96
    %v239 = vpop.permute.xlu0 %238
    %240 = vrot.lane.b32.xlu0 %v174, 96
    %v241 = vpop.permute.xlu0 %240
    %242 = vrot.lane.b32.xlu0 %v176, 96
    %v243 = vpop.permute.xlu0 %242
    %244 = vrot.lane.b32.xlu0 %v179, 96
    %v245 = vpop.permute.xlu0 %244
    %246 = vrot.lane.b32.xlu0 %v181, 96
    %v247 = vpop.permute.xlu0 %246
    %248 = vrot.lane.b32.xlu0 %v184, 96
    %v249 = vpop.permute.xlu0 %248
    %250 = vrot.lane.b32.xlu0 %v186, 96
    %v251 = vpop.permute.xlu0 %250
    %268 = vxpose.xlu0.b32.start [1/16] %v221, 128
    %269 = vxpose.xlu0.b32.cont [2/16] 0.0, 128
    %270 = vxpose.xlu0.b32.cont [3/16] 0.0, 128
    %271 = vxpose.xlu0.b32.cont [4/16] 0.0, 128
    %272 = vxpose.xlu0.b32.cont [5/16] 0.0, 128
    %273 = vxpose.xlu0.b32.cont [6/16] 0.0, 128
    %274 = vxpose.xlu0.b32.cont [7/16] 0.0, 128
    %275 = vxpose.xlu0.b32.cont [8/16] 0.0, 128
    %276 = vxpose.xlu0.b32.cont [9/16] 0.0, 128
    %277 = vxpose.xlu0.b32.cont [10/16] 0.0, 128
    %278 = vxpose.xlu0.b32.cont [11/16] 0.0, 128
    %279 = vxpose.xlu0.b32.cont [12/16] 0.0, 128
    %280 = vxpose.xlu0.b32.cont [13/16] 0.0, 128
    %281 = vxpose.xlu0.b32.cont [14/16] 0.0, 128
    %282 = vxpose.xlu0.b32.cont [15/16] 0.0, 128
    %283 = vxpose.xlu0.b32.end [16/16] 0.0, 128
    %v284 = vpop.trf.xlu0
    %v285 = vpop.trf.xlu0
    %v286 = vpop.trf.xlu0
    %v287 = vpop.trf.xlu0
    %v288 = vpop.trf.xlu0
    %v289 = vpop.trf.xlu0
    %v290 = vpop.trf.xlu0
    %v291 = vpop.trf.xlu0
    %v292 = vpop.trf.xlu0
    %v293 = vpop.trf.xlu0
    %v294 = vpop.trf.xlu0
    %v295 = vpop.trf.xlu0
    %v296 = vpop.trf.xlu0
    %v297 = vpop.trf.xlu0
    %v298 = vpop.trf.xlu0
    %v299 = vpop.trf.xlu0
    %300 = vxpose.xlu0.b32.start [1/16] %v223, 128
    %301 = vxpose.xlu0.b32.cont [2/16] 0.0, 128
    %302 = vxpose.xlu0.b32.cont [3/16] 0.0, 128
    %303 = vxpose.xlu0.b32.cont [4/16] 0.0, 128
    %304 = vxpose.xlu0.b32.cont [5/16] 0.0, 128
    %305 = vxpose.xlu0.b32.cont [6/16] 0.0, 128
    %306 = vxpose.xlu0.b32.cont [7/16] 0.0, 128
    %307 = vxpose.xlu0.b32.cont [8/16] 0.0, 128
    %308 = vxpose.xlu0.b32.cont [9/16] 0.0, 128
    %309 = vxpose.xlu0.b32.cont [10/16] 0.0, 128
    %310 = vxpose.xlu0.b32.cont [11/16] 0.0, 128
    %311 = vxpose.xlu0.b32.cont [12/16] 0.0, 128
    %312 = vxpose.xlu0.b32.cont [13/16] 0.0, 128
    %313 = vxpose.xlu0.b32.cont [14/16] 0.0, 128
    %314 = vxpose.xlu0.b32.cont [15/16] 0.0, 128
    %315 = vxpose.xlu0.b32.end [16/16] 0.0, 128
    %v316 = vpop.trf.xlu0
    %v317 = vpop.trf.xlu0
    %v318 = vpop.trf.xlu0
    %v319 = vpop.trf.xlu0
    %v320 = vpop.trf.xlu0
    %v321 = vpop.trf.xlu0
    %v322 = vpop.trf.xlu0
    %v323 = vpop.trf.xlu0
    %v324 = vpop.trf.xlu0
    %v325 = vpop.trf.xlu0
    %v326 = vpop.trf.xlu0
    %v327 = vpop.trf.xlu0
    %v328 = vpop.trf.xlu0
    %v329 = vpop.trf.xlu0
    %v330 = vpop.trf.xlu0
    %v331 = vpop.trf.xlu0
    %332 = vxpose.xlu0.b32.start [1/16] %v225, 128
    %333 = vxpose.xlu0.b32.cont [2/16] 0.0, 128
    %334 = vxpose.xlu0.b32.cont [3/16] 0.0, 128
    %335 = vxpose.xlu0.b32.cont [4/16] 0.0, 128
    %336 = vxpose.xlu0.b32.cont [5/16] 0.0, 128
    %337 = vxpose.xlu0.b32.cont [6/16] 0.0, 128
    %338 = vxpose.xlu0.b32.cont [7/16] 0.0, 128
    %339 = vxpose.xlu0.b32.cont [8/16] 0.0, 128
    %340 = vxpose.xlu0.b32.cont [9/16] 0.0, 128
    %341 = vxpose.xlu0.b32.cont [10/16] 0.0, 128
    %342 = vxpose.xlu0.b32.cont [11/16] 0.0, 128
    %343 = vxpose.xlu0.b32.cont [12/16] 0.0, 128
    %344 = vxpose.xlu0.b32.cont [13/16] 0.0, 128
    %345 = vxpose.xlu0.b32.cont [14/16] 0.0, 128
    %346 = vxpose.xlu0.b32.cont [15/16] 0.0, 128
    %347 = vxpose.xlu0.b32.end [16/16] 0.0, 128
    %v348 = vpop.trf.xlu0
    %v349 = vpop.trf.xlu0
    %v350 = vpop.trf.xlu0
    %v351 = vpop.trf.xlu0
    %v352 = vpop.trf.xlu0
    %v353 = vpop.trf.xlu0
    %v354 = vpop.trf.xlu0
    %v355 = vpop.trf.xlu0
    %v356 = vpop.trf.xlu0
    %v357 = vpop.trf.xlu0
    %v358 = vpop.trf.xlu0
    %v359 = vpop.trf.xlu0
    %v360 = vpop.trf.xlu0
    %v361 = vpop.trf.xlu0
    %v362 = vpop.trf.xlu0
    %v363 = vpop.trf.xlu0
    %364 = vxpose.xlu0.b32.start [1/16] %v227, 128
    %365 = vxpose.xlu0.b32.cont [2/16] 0.0, 128
    %366 = vxpose.xlu0.b32.cont [3/16] 0.0, 128
    %367 = vxpose.xlu0.b32.cont [4/16] 0.0, 128
    %368 = vxpose.xlu0.b32.cont [5/16] 0.0, 128
    %369 = vxpose.xlu0.b32.cont [6/16] 0.0, 128
    %370 = vxpose.xlu0.b32.cont [7/16] 0.0, 128
    %371 = vxpose.xlu0.b32.cont [8/16] 0.0, 128
    %372 = vxpose.xlu0.b32.cont [9/16] 0.0, 128
    %373 = vxpose.xlu0.b32.cont [10/16] 0.0, 128
    %374 = vxpose.xlu0.b32.cont [11/16] 0.0, 128
    %375 = vxpose.xlu0.b32.cont [12/16] 0.0, 128
    %376 = vxpose.xlu0.b32.cont [13/16] 0.0, 128
    %377 = vxpose.xlu0.b32.cont [14/16] 0.0, 128
    %378 = vxpose.xlu0.b32.cont [15/16] 0.0, 128
    %379 = vxpose.xlu0.b32.end [16/16] 0.0, 128
    %v380 = vpop.trf.xlu0
    %v381 = vpop.trf.xlu0
    %v382 = vpop.trf.xlu0
    %v383 = vpop.trf.xlu0
    %v384 = vpop.trf.xlu0
    %v385 = vpop.trf.xlu0
    %v386 = vpop.trf.xlu0
    %v387 = vpop.trf.xlu0
    %v388 = vpop.trf.xlu0
    %v389 = vpop.trf.xlu0
    %v390 = vpop.trf.xlu0
    %v391 = vpop.trf.xlu0
    %v392 = vpop.trf.xlu0
    %v393 = vpop.trf.xlu0
    %v394 = vpop.trf.xlu0
    %v395 = vpop.trf.xlu0
    %396 = vxpose.xlu0.b32.start [1/16] %v229, 128
    %397 = vxpose.xlu0.b32.cont [2/16] 0.0, 128
    %398 = vxpose.xlu0.b32.cont [3/16] 0.0, 128
    %399 = vxpose.xlu0.b32.cont [4/16] 0.0, 128
    %400 = vxpose.xlu0.b32.cont [5/16] 0.0, 128
    %401 = vxpose.xlu0.b32.cont [6/16] 0.0, 128
    %402 = vxpose.xlu0.b32.cont [7/16] 0.0, 128
    %403 = vxpose.xlu0.b32.cont [8/16] 0.0, 128
    %404 = vxpose.xlu0.b32.cont [9/16] 0.0, 128
    %405 = vxpose.xlu0.b32.cont [10/16] 0.0, 128
    %406 = vxpose.xlu0.b32.cont [11/16] 0.0, 128
    %407 = vxpose.xlu0.b32.cont [12/16] 0.0, 128
    %408 = vxpose.xlu0.b32.cont [13/16] 0.0, 128
    %409 = vxpose.xlu0.b32.cont [14/16] 0.0, 128
    %410 = vxpose.xlu0.b32.cont [15/16] 0.0, 128
    %411 = vxpose.xlu0.b32.end [16/16] 0.0, 128
    %v412 = vpop.trf.xlu0
    %v413 = vpop.trf.xlu0
    %v414 = vpop.trf.xlu0
    %v415 = vpop.trf.xlu0
    %v416 = vpop.trf.xlu0
    %v417 = vpop.trf.xlu0
    %v418 = vpop.trf.xlu0
    %v419 = vpop.trf.xlu0
    %v420 = vpop.trf.xlu0
    %v421 = vpop.trf.xlu0
    %v422 = vpop.trf.xlu0
    %v423 = vpop.trf.xlu0
    %v424 = vpop.trf.xlu0
    %v425 = vpop.trf.xlu0
    %v426 = vpop.trf.xlu0
    %v427 = vpop.trf.xlu0
    %428 = vxpose.xlu0.b32.start [1/16] %v231, 128
    %429 = vxpose.xlu0.b32.cont [2/16] 0.0, 128
    %430 = vxpose.xlu0.b32.cont [3/16] 0.0, 128
    %431 = vxpose.xlu0.b32.cont [4/16] 0.0, 128
    %432 = vxpose.xlu0.b32.cont [5/16] 0.0, 128
    %433 = vxpose.xlu0.b32.cont [6/16] 0.0, 128
    %434 = vxpose.xlu0.b32.cont [7/16] 0.0, 128
    %435 = vxpose.xlu0.b32.cont [8/16] 0.0, 128
    %436 = vxpose.xlu0.b32.cont [9/16] 0.0, 128
    %437 = vxpose.xlu0.b32.cont [10/16] 0.0, 128
    %438 = vxpose.xlu0.b32.cont [11/16] 0.0, 128
    %439 = vxpose.xlu0.b32.cont [12/16] 0.0, 128
    %440 = vxpose.xlu0.b32.cont [13/16] 0.0, 128
    %441 = vxpose.xlu0.b32.cont [14/16] 0.0, 128
    %442 = vxpose.xlu0.b32.cont [15/16] 0.0, 128
    %443 = vxpose.xlu0.b32.end [16/16] 0.0, 128
    %v444 = vpop.trf.xlu0
    %v445 = vpop.trf.xlu0
    %v446 = vpop.trf.xlu0
    %v447 = vpop.trf.xlu0
    %v448 = vpop.trf.xlu0
    %v449 = vpop.trf.xlu0
    %v450 = vpop.trf.xlu0
    %v451 = vpop.trf.xlu0
    %v452 = vpop.trf.xlu0
    %v453 = vpop.trf.xlu0
    %v454 = vpop.trf.xlu0
    %v455 = vpop.trf.xlu0
    %v456 = vpop.trf.xlu0
    %v457 = vpop.trf.xlu0
    %v458 = vpop.trf.xlu0
    %v459 = vpop.trf.xlu0
    %460 = vxpose.xlu0.b32.start [1/16] %v233, 128
    %461 = vxpose.xlu0.b32.cont [2/16] 0.0, 128
    %462 = vxpose.xlu0.b32.cont [3/16] 0.0, 128
    %463 = vxpose.xlu0.b32.cont [4/16] 0.0, 128
    %464 = vxpose.xlu0.b32.cont [5/16] 0.0, 128
    %465 = vxpose.xlu0.b32.cont [6/16] 0.0, 128
    %466 = vxpose.xlu0.b32.cont [7/16] 0.0, 128
    %467 = vxpose.xlu0.b32.cont [8/16] 0.0, 128
    %468 = vxpose.xlu0.b32.cont [9/16] 0.0, 128
    %469 = vxpose.xlu0.b32.cont [10/16] 0.0, 128
    %470 = vxpose.xlu0.b32.cont [11/16] 0.0, 128
    %471 = vxpose.xlu0.b32.cont [12/16] 0.0, 128
    %472 = vxpose.xlu0.b32.cont [13/16] 0.0, 128
    %473 = vxpose.xlu0.b32.cont [14/16] 0.0, 128
    %474 = vxpose.xlu0.b32.cont [15/16] 0.0, 128
    %475 = vxpose.xlu0.b32.end [16/16] 0.0, 128
    %v476 = vpop.trf.xlu0
    %v477 = vpop.trf.xlu0
    %v478 = vpop.trf.xlu0
    %v479 = vpop.trf.xlu0
    %v480 = vpop.trf.xlu0
    %v481 = vpop.trf.xlu0
    %v482 = vpop.trf.xlu0
    %v483 = vpop.trf.xlu0
    %v484 = vpop.trf.xlu0
    %v485 = vpop.trf.xlu0
    %v486 = vpop.trf.xlu0
    %v487 = vpop.trf.xlu0
    %v488 = vpop.trf.xlu0
    %v489 = vpop.trf.xlu0
    %v490 = vpop.trf.xlu0
    %v491 = vpop.trf.xlu0
    %492 = vxpose.xlu0.b32.start [1/16] %v235, 128
    %493 = vxpose.xlu0.b32.cont [2/16] 0.0, 128
    %494 = vxpose.xlu0.b32.cont [3/16] 0.0, 128
    %495 = vxpose.xlu0.b32.cont [4/16] 0.0, 128
    %496 = vxpose.xlu0.b32.cont [5/16] 0.0, 128
    %497 = vxpose.xlu0.b32.cont [6/16] 0.0, 128
    %498 = vxpose.xlu0.b32.cont [7/16] 0.0, 128
    %499 = vxpose.xlu0.b32.cont [8/16] 0.0, 128
    %500 = vxpose.xlu0.b32.cont [9/16] 0.0, 128
    %501 = vxpose.xlu0.b32.cont [10/16] 0.0, 128
    %502 = vxpose.xlu0.b32.cont [11/16] 0.0, 128
    %503 = vxpose.xlu0.b32.cont [12/16] 0.0, 128
    %504 = vxpose.xlu0.b32.cont [13/16] 0.0, 128
    %505 = vxpose.xlu0.b32.cont [14/16] 0.0, 128
    %506 = vxpose.xlu0.b32.cont [15/16] 0.0, 128
    %507 = vxpose.xlu0.b32.end [16/16] 0.0, 128
    %v508 = vpop.trf.xlu0
    %v509 = vpop.trf.xlu0
    %v510 = vpop.trf.xlu0
    %v511 = vpop.trf.xlu0
    %v512 = vpop.trf.xlu0
    %v513 = vpop.trf.xlu0
    %v514 = vpop.trf.xlu0
    %v515 = vpop.trf.xlu0
    %v516 = vpop.trf.xlu0
    %v517 = vpop.trf.xlu0
    %v518 = vpop.trf.xlu0
    %v519 = vpop.trf.xlu0
    %v520 = vpop.trf.xlu0
    %v521 = vpop.trf.xlu0
    %v522 = vpop.trf.xlu0
    %v523 = vpop.trf.xlu0
    %524 = vxpose.xlu0.b32.start [1/16] %v237, 128
    %525 = vxpose.xlu0.b32.cont [2/16] 0.0, 128
    %526 = vxpose.xlu0.b32.cont [3/16] 0.0, 128
    %527 = vxpose.xlu0.b32.cont [4/16] 0.0, 128
    %528 = vxpose.xlu0.b32.cont [5/16] 0.0, 128
    %529 = vxpose.xlu0.b32.cont [6/16] 0.0, 128
    %530 = vxpose.xlu0.b32.cont [7/16] 0.0, 128
    %531 = vxpose.xlu0.b32.cont [8/16] 0.0, 128
    %532 = vxpose.xlu0.b32.cont [9/16] 0.0, 128
    %533 = vxpose.xlu0.b32.cont [10/16] 0.0, 128
    %534 = vxpose.xlu0.b32.cont [11/16] 0.0, 128
    %535 = vxpose.xlu0.b32.cont [12/16] 0.0, 128
    %536 = vxpose.xlu0.b32.cont [13/16] 0.0, 128
    %537 = vxpose.xlu0.b32.cont [14/16] 0.0, 128
    %538 = vxpose.xlu0.b32.cont [15/16] 0.0, 128
    %539 = vxpose.xlu0.b32.end [16/16] 0.0, 128
    %v540 = vpop.trf.xlu0
    %v541 = vpop.trf.xlu0
    %v542 = vpop.trf.xlu0
    %v543 = vpop.trf.xlu0
    %v544 = vpop.trf.xlu0
    %v545 = vpop.trf.xlu0
    %v546 = vpop.trf.xlu0
    %v547 = vpop.trf.xlu0
    %v548 = vpop.trf.xlu0
    %v549 = vpop.trf.xlu0
    %v550 = vpop.trf.xlu0
    %v551 = vpop.trf.xlu0
    %v552 = vpop.trf.xlu0
    %v553 = vpop.trf.xlu0
    %v554 = vpop.trf.xlu0
    %v555 = vpop.trf.xlu0
    %556 = vxpose.xlu0.b32.start [1/16] %v239, 128
    %557 = vxpose.xlu0.b32.cont [2/16] 0.0, 128
    %558 = vxpose.xlu0.b32.cont [3/16] 0.0, 128
    %559 = vxpose.xlu0.b32.cont [4/16] 0.0, 128
    %560 = vxpose.xlu0.b32.cont [5/16] 0.0, 128
    %561 = vxpose.xlu0.b32.cont [6/16] 0.0, 128
    %562 = vxpose.xlu0.b32.cont [7/16] 0.0, 128
    %563 = vxpose.xlu0.b32.cont [8/16] 0.0, 128
    %564 = vxpose.xlu0.b32.cont [9/16] 0.0, 128
    %565 = vxpose.xlu0.b32.cont [10/16] 0.0, 128
    %566 = vxpose.xlu0.b32.cont [11/16] 0.0, 128
    %567 = vxpose.xlu0.b32.cont [12/16] 0.0, 128
    %568 = vxpose.xlu0.b32.cont [13/16] 0.0, 128
    %569 = vxpose.xlu0.b32.cont [14/16] 0.0, 128
    %570 = vxpose.xlu0.b32.cont [15/16] 0.0, 128
    %571 = vxpose.xlu0.b32.end [16/16] 0.0, 128
    %v572 = vpop.trf.xlu0
    %v573 = vpop.trf.xlu0
    %v574 = vpop.trf.xlu0
    %v575 = vpop.trf.xlu0
    %v576 = vpop.trf.xlu0
    %v577 = vpop.trf.xlu0
    %v578 = vpop.trf.xlu0
    %v579 = vpop.trf.xlu0
    %v580 = vpop.trf.xlu0
    %v581 = vpop.trf.xlu0
    %v582 = vpop.trf.xlu0
    %v583 = vpop.trf.xlu0
    %v584 = vpop.trf.xlu0
    %v585 = vpop.trf.xlu0
    %v586 = vpop.trf.xlu0
    %v587 = vpop.trf.xlu0
    %588 = vxpose.xlu0.b32.start [1/16] %v241, 128
    %589 = vxpose.xlu0.b32.cont [2/16] 0.0, 128
    %590 = vxpose.xlu0.b32.cont [3/16] 0.0, 128
    %591 = vxpose.xlu0.b32.cont [4/16] 0.0, 128
    %592 = vxpose.xlu0.b32.cont [5/16] 0.0, 128
    %593 = vxpose.xlu0.b32.cont [6/16] 0.0, 128
    %594 = vxpose.xlu0.b32.cont [7/16] 0.0, 128
    %595 = vxpose.xlu0.b32.cont [8/16] 0.0, 128
    %596 = vxpose.xlu0.b32.cont [9/16] 0.0, 128
    %597 = vxpose.xlu0.b32.cont [10/16] 0.0, 128
    %598 = vxpose.xlu0.b32.cont [11/16] 0.0, 128
    %599 = vxpose.xlu0.b32.cont [12/16] 0.0, 128
    %600 = vxpose.xlu0.b32.cont [13/16] 0.0, 128
    %601 = vxpose.xlu0.b32.cont [14/16] 0.0, 128
    %602 = vxpose.xlu0.b32.cont [15/16] 0.0, 128
    %603 = vxpose.xlu0.b32.end [16/16] 0.0, 128
    %v604 = vpop.trf.xlu0
    %v605 = vpop.trf.xlu0
    %v606 = vpop.trf.xlu0
    %v607 = vpop.trf.xlu0
    %v608 = vpop.trf.xlu0
    %v609 = vpop.trf.xlu0
    %v610 = vpop.trf.xlu0
    %v611 = vpop.trf.xlu0
    %v612 = vpop.trf.xlu0
    %v613 = vpop.trf.xlu0
    %v614 = vpop.trf.xlu0
    %v615 = vpop.trf.xlu0
    %v616 = vpop.trf.xlu0
    %v617 = vpop.trf.xlu0
    %v618 = vpop.trf.xlu0
    %v619 = vpop.trf.xlu0
    %620 = vxpose.xlu0.b32.start [1/16] %v243, 128
    %621 = vxpose.xlu0.b32.cont [2/16] 0.0, 128
    %622 = vxpose.xlu0.b32.cont [3/16] 0.0, 128
    %623 = vxpose.xlu0.b32.cont [4/16] 0.0, 128
    %624 = vxpose.xlu0.b32.cont [5/16] 0.0, 128
    %625 = vxpose.xlu0.b32.cont [6/16] 0.0, 128
    %626 = vxpose.xlu0.b32.cont [7/16] 0.0, 128
    %627 = vxpose.xlu0.b32.cont [8/16] 0.0, 128
    %628 = vxpose.xlu0.b32.cont [9/16] 0.0, 128
    %629 = vxpose.xlu0.b32.cont [10/16] 0.0, 128
    %630 = vxpose.xlu0.b32.cont [11/16] 0.0, 128
    %631 = vxpose.xlu0.b32.cont [12/16] 0.0, 128
    %632 = vxpose.xlu0.b32.cont [13/16] 0.0, 128
    %633 = vxpose.xlu0.b32.cont [14/16] 0.0, 128
    %634 = vxpose.xlu0.b32.cont [15/16] 0.0, 128
    %635 = vxpose.xlu0.b32.end [16/16] 0.0, 128
    %v636 = vpop.trf.xlu0
    %v637 = vpop.trf.xlu0
    %v638 = vpop.trf.xlu0
    %v639 = vpop.trf.xlu0
    %v640 = vpop.trf.xlu0
    %v641 = vpop.trf.xlu0
    %v642 = vpop.trf.xlu0
    %v643 = vpop.trf.xlu0
    %v644 = vpop.trf.xlu0
    %v645 = vpop.trf.xlu0
    %v646 = vpop.trf.xlu0
    %v647 = vpop.trf.xlu0
    %v648 = vpop.trf.xlu0
    %v649 = vpop.trf.xlu0
    %v650 = vpop.trf.xlu0
    %v651 = vpop.trf.xlu0
    %652 = vxpose.xlu0.b32.start [1/16] %v245, 128
    %653 = vxpose.xlu0.b32.cont [2/16] 0.0, 128
    %654 = vxpose.xlu0.b32.cont [3/16] 0.0, 128
    %655 = vxpose.xlu0.b32.cont [4/16] 0.0, 128
    %656 = vxpose.xlu0.b32.cont [5/16] 0.0, 128
    %657 = vxpose.xlu0.b32.cont [6/16] 0.0, 128
    %658 = vxpose.xlu0.b32.cont [7/16] 0.0, 128
    %659 = vxpose.xlu0.b32.cont [8/16] 0.0, 128
    %660 = vxpose.xlu0.b32.cont [9/16] 0.0, 128
    %661 = vxpose.xlu0.b32.cont [10/16] 0.0, 128
    %662 = vxpose.xlu0.b32.cont [11/16] 0.0, 128
    %663 = vxpose.xlu0.b32.cont [12/16] 0.0, 128
    %664 = vxpose.xlu0.b32.cont [13/16] 0.0, 128
    %665 = vxpose.xlu0.b32.cont [14/16] 0.0, 128
    %666 = vxpose.xlu0.b32.cont [15/16] 0.0, 128
    %667 = vxpose.xlu0.b32.end [16/16] 0.0, 128
    %v668 = vpop.trf.xlu0
    %v669 = vpop.trf.xlu0
    %v670 = vpop.trf.xlu0
    %v671 = vpop.trf.xlu0
    %v672 = vpop.trf.xlu0
    %v673 = vpop.trf.xlu0
    %v674 = vpop.trf.xlu0
    %v675 = vpop.trf.xlu0
    %v676 = vpop.trf.xlu0
    %v677 = vpop.trf.xlu0
    %v678 = vpop.trf.xlu0
    %v679 = vpop.trf.xlu0
    %v680 = vpop.trf.xlu0
    %v681 = vpop.trf.xlu0
    %v682 = vpop.trf.xlu0
    %v683 = vpop.trf.xlu0
    %684 = vxpose.xlu0.b32.start [1/16] %v247, 128
    %685 = vxpose.xlu0.b32.cont [2/16] 0.0, 128
    %686 = vxpose.xlu0.b32.cont [3/16] 0.0, 128
    %687 = vxpose.xlu0.b32.cont [4/16] 0.0, 128
    %688 = vxpose.xlu0.b32.cont [5/16] 0.0, 128
    %689 = vxpose.xlu0.b32.cont [6/16] 0.0, 128
    %690 = vxpose.xlu0.b32.cont [7/16] 0.0, 128
    %691 = vxpose.xlu0.b32.cont [8/16] 0.0, 128
    %692 = vxpose.xlu0.b32.cont [9/16] 0.0, 128
    %693 = vxpose.xlu0.b32.cont [10/16] 0.0, 128
    %694 = vxpose.xlu0.b32.cont [11/16] 0.0, 128
    %695 = vxpose.xlu0.b32.cont [12/16] 0.0, 128
    %696 = vxpose.xlu0.b32.cont [13/16] 0.0, 128
    %697 = vxpose.xlu0.b32.cont [14/16] 0.0, 128
    %698 = vxpose.xlu0.b32.cont [15/16] 0.0, 128
    %699 = vxpose.xlu0.b32.end [16/16] 0.0, 128
    %v700 = vpop.trf.xlu0
    %v701 = vpop.trf.xlu0
    %v702 = vpop.trf.xlu0
    %v703 = vpop.trf.xlu0
    %v704 = vpop.trf.xlu0
    %v705 = vpop.trf.xlu0
    %v706 = vpop.trf.xlu0
    %v707 = vpop.trf.xlu0
    %v708 = vpop.trf.xlu0
    %v709 = vpop.trf.xlu0
    %v710 = vpop.trf.xlu0
    %v711 = vpop.trf.xlu0
    %v712 = vpop.trf.xlu0
    %v713 = vpop.trf.xlu0
    %v714 = vpop.trf.xlu0
    %v715 = vpop.trf.xlu0
    %716 = vxpose.xlu0.b32.start [1/16] %v249, 128
    %717 = vxpose.xlu0.b32.cont [2/16] 0.0, 128
    %718 = vxpose.xlu0.b32.cont [3/16] 0.0, 128
    %719 = vxpose.xlu0.b32.cont [4/16] 0.0, 128
    %720 = vxpose.xlu0.b32.cont [5/16] 0.0, 128
    %721 = vxpose.xlu0.b32.cont [6/16] 0.0, 128
    %722 = vxpose.xlu0.b32.cont [7/16] 0.0, 128
    %723 = vxpose.xlu0.b32.cont [8/16] 0.0, 128
    %724 = vxpose.xlu0.b32.cont [9/16] 0.0, 128
    %725 = vxpose.xlu0.b32.cont [10/16] 0.0, 128
    %726 = vxpose.xlu0.b32.cont [11/16] 0.0, 128
    %727 = vxpose.xlu0.b32.cont [12/16] 0.0, 128
    %728 = vxpose.xlu0.b32.cont [13/16] 0.0, 128
    %729 = vxpose.xlu0.b32.cont [14/16] 0.0, 128
    %730 = vxpose.xlu0.b32.cont [15/16] 0.0, 128
    %731 = vxpose.xlu0.b32.end [16/16] 0.0, 128
    %v732 = vpop.trf.xlu0
    %v733 = vpop.trf.xlu0
    %v734 = vpop.trf.xlu0
    %v735 = vpop.trf.xlu0
    %v736 = vpop.trf.xlu0
    %v737 = vpop.trf.xlu0
    %v738 = vpop.trf.xlu0
    %v739 = vpop.trf.xlu0
    %v740 = vpop.trf.xlu0
    %v741 = vpop.trf.xlu0
    %v742 = vpop.trf.xlu0
    %v743 = vpop.trf.xlu0
    %v744 = vpop.trf.xlu0
    %v745 = vpop.trf.xlu0
    %v746 = vpop.trf.xlu0
    %v747 = vpop.trf.xlu0
    %748 = vxpose.xlu0.b32.start [1/16] %v251, 128
    %749 = vxpose.xlu0.b32.cont [2/16] 0.0, 128
    %750 = vxpose.xlu0.b32.cont [3/16] 0.0, 128
    %751 = vxpose.xlu0.b32.cont [4/16] 0.0, 128
    %752 = vxpose.xlu0.b32.cont [5/16] 0.0, 128
    %753 = vxpose.xlu0.b32.cont [6/16] 0.0, 128
    %754 = vxpose.xlu0.b32.cont [7/16] 0.0, 128
    %755 = vxpose.xlu0.b32.cont [8/16] 0.0, 128
    %756 = vxpose.xlu0.b32.cont [9/16] 0.0, 128
    %757 = vxpose.xlu0.b32.cont [10/16] 0.0, 128
    %758 = vxpose.xlu0.b32.cont [11/16] 0.0, 128
    %759 = vxpose.xlu0.b32.cont [12/16] 0.0, 128
    %760 = vxpose.xlu0.b32.cont [13/16] 0.0, 128
    %761 = vxpose.xlu0.b32.cont [14/16] 0.0, 128
    %762 = vxpose.xlu0.b32.cont [15/16] 0.0, 128
    %763 = vxpose.xlu0.b32.end [16/16] 0.0, 128
    %v764 = vpop.trf.xlu0
    %v765 = vpop.trf.xlu0
    %v766 = vpop.trf.xlu0
    %v767 = vpop.trf.xlu0
    %v768 = vpop.trf.xlu0
    %v769 = vpop.trf.xlu0
    %v770 = vpop.trf.xlu0
    %v771 = vpop.trf.xlu0
    %v772 = vpop.trf.xlu0
    %v773 = vpop.trf.xlu0
    %v774 = vpop.trf.xlu0
    %v775 = vpop.trf.xlu0
    %v776 = vpop.trf.xlu0
    %v777 = vpop.trf.xlu0
    %v778 = vpop.trf.xlu0
    %v779 = vpop.trf.xlu0
    %v780 = vld [vmem:[%s1] sm:$0xff]
    %v781 = vld [vmem:[%s1 + $0x8] sm:$0xff]
    %v784 = vrot.slane %v780, 1
    %v785 = vrot.slane %v780, 2
    %v786 = vrot.slane %v780, 3
    %v787 = vrot.slane %v780, 4
    %v788 = vrot.slane %v780, 5
    %v789 = vrot.slane %v780, 6
    %v790 = vrot.slane %v780, 7
    %v791 = vrot.slane %v781, 1
    %v792 = vrot.slane %v781, 2
    %v793 = vrot.slane %v781, 3
    %v794 = vrot.slane %v781, 4
    %v795 = vrot.slane %v781, 5
    %v796 = vrot.slane %v781, 6
    %v797 = vrot.slane %v781, 7
    %v798 = vperm.slane %v780, 0
    %v799 = vperm.slane %v784, 0
    %v800 = vperm.slane %v785, 0
    %v801 = vperm.slane %v786, 0
    %v802 = vperm.slane %v787, 0
    %v803 = vperm.slane %v788, 0
    %v804 = vperm.slane %v789, 0
    %v805 = vperm.slane %v790, 0
    %v806 = vperm.slane %v781, 0
    %v807 = vperm.slane %v791, 0
    %v808 = vperm.slane %v792, 0
    %v809 = vperm.slane %v793, 0
    %v810 = vperm.slane %v794, 0
    %v811 = vperm.slane %v795, 0
    %v812 = vperm.slane %v796, 0
    %v813 = vperm.slane %v797, 0
    %v830 = vadd.f32 %v284, %v798
    %v831 = vadd.f32 %v316, %v799
    %v832 = vadd.f32 %v348, %v800
    %v833 = vadd.f32 %v380, %v801
    %v834 = vadd.f32 %v412, %v802
    %v835 = vadd.f32 %v444, %v803
    %v836 = vadd.f32 %v476, %v804
    %v837 = vadd.f32 %v508, %v805
    %v838 = vadd.f32 %v540, %v806
    %v839 = vadd.f32 %v572, %v807
    %v840 = vadd.f32 %v604, %v808
    %v841 = vadd.f32 %v636, %v809
    %v842 = vadd.f32 %v668, %v810
    %v843 = vadd.f32 %v700, %v811
    %v844 = vadd.f32 %v732, %v812
    %v845 = vadd.f32 %v764, %v813
    %vm846 = vcmask 60416
    %v847 = vsel %vm846, %v830, -inf
    %848 = vmax.xlane.f32.xlu0 %v847
    %v849 = vpop.xlane.xlu0 %848
    %v850 = vsel %vm846, %v831, -inf
    %851 = vmax.xlane.f32.xlu0 %v850
    %v852 = vpop.xlane.xlu0 %851
    %v853 = vsel %vm846, %v832, -inf
    %854 = vmax.xlane.f32.xlu0 %v853
    %v855 = vpop.xlane.xlu0 %854
    %v856 = vsel %vm846, %v833, -inf
    %857 = vmax.xlane.f32.xlu0 %v856
    %v858 = vpop.xlane.xlu0 %857
    %v859 = vsel %vm846, %v834, -inf
    %860 = vmax.xlane.f32.xlu0 %v859
    %v861 = vpop.xlane.xlu0 %860
    %v862 = vsel %vm846, %v835, -inf
    %863 = vmax.xlane.f32.xlu0 %v862
    %v864 = vpop.xlane.xlu0 %863
    %v865 = vsel %vm846, %v836, -inf
    %866 = vmax.xlane.f32.xlu0 %v865
    %v867 = vpop.xlane.xlu0 %866
    %v868 = vsel %vm846, %v837, -inf
    %869 = vmax.xlane.f32.xlu0 %v868
    %v870 = vpop.xlane.xlu0 %869
    %v871 = vsel %vm846, %v838, -inf
    %872 = vmax.xlane.f32.xlu0 %v871
    %v873 = vpop.xlane.xlu0 %872
    %v874 = vsel %vm846, %v839, -inf
    %875 = vmax.xlane.f32.xlu0 %v874
    %v876 = vpop.xlane.xlu0 %875
    %v877 = vsel %vm846, %v840, -inf
    %878 = vmax.xlane.f32.xlu0 %v877
    %v879 = vpop.xlane.xlu0 %878
    %v880 = vsel %vm846, %v841, -inf
    %881 = vmax.xlane.f32.xlu0 %v880
    %v882 = vpop.xlane.xlu0 %881
    %v883 = vsel %vm846, %v842, -inf
    %884 = vmax.xlane.f32.xlu0 %v883
    %v885 = vpop.xlane.xlu0 %884
    %v886 = vsel %vm846, %v843, -inf
    %887 = vmax.xlane.f32.xlu0 %v886
    %v888 = vpop.xlane.xlu0 %887
    %v889 = vsel %vm846, %v844, -inf
    %890 = vmax.xlane.f32.xlu0 %v889
    %v891 = vpop.xlane.xlu0 %890
    %v892 = vsel %vm846, %v845, -inf
    %893 = vmax.xlane.f32.xlu0 %v892
    %v894 = vpop.xlane.xlu0 %893
    %v895 = vsub.f32 %v830, %v849
    %v896 = vsub.f32 %v831, %v852
    %v897 = vsub.f32 %v832, %v855
    %v898 = vsub.f32 %v833, %v858
    %v899 = vsub.f32 %v834, %v861
    %v900 = vsub.f32 %v835, %v864
    %v901 = vsub.f32 %v836, %v867
    %v902 = vsub.f32 %v837, %v870
    %v903 = vsub.f32 %v838, %v873
    %v904 = vsub.f32 %v839, %v876
    %v905 = vsub.f32 %v840, %v879
    %v906 = vsub.f32 %v841, %v882
    %v907 = vsub.f32 %v842, %v885
    %v908 = vsub.f32 %v843, %v888
    %v909 = vsub.f32 %v844, %v891
    %v910 = vsub.f32 %v845, %v894
    %v911 = vmul.f32 %v895, 1.442695
    %v912 = vpow.pop %v911
    %v913 = vmul.f32 %v896, 1.442695
    %v914 = vpow.pop %v913
    %v915 = vmul.f32 %v897, 1.442695
    %v916 = vpow.pop %v915
    %v917 = vmul.f32 %v898, 1.442695
    %v918 = vpow.pop %v917
    %v919 = vmul.f32 %v899, 1.442695
    %v920 = vpow.pop %v919
    %v921 = vmul.f32 %v900, 1.442695
    %v922 = vpow.pop %v921
    %v923 = vmul.f32 %v901, 1.442695
    %v924 = vpow.pop %v923
    %v925 = vmul.f32 %v902, 1.442695
    %v926 = vpow.pop %v925
    %v927 = vmul.f32 %v903, 1.442695
    %v928 = vpow.pop %v927
    %v929 = vmul.f32 %v904, 1.442695
    %v930 = vpow.pop %v929
    %v931 = vmul.f32 %v905, 1.442695
    %v932 = vpow.pop %v931
    %v933 = vmul.f32 %v906, 1.442695
    %v934 = vpow.pop %v933
    %v935 = vmul.f32 %v907, 1.442695
    %v936 = vpow.pop %v935
    %v937 = vmul.f32 %v908, 1.442695
    %v938 = vpow.pop %v937
    %v939 = vmul.f32 %v909, 1.442695
    %v940 = vpow.pop %v939
    %v941 = vmul.f32 %v910, 1.442695
    %v942 = vpow.pop %v941
    %v943 = vsel %vm846, %v912, 0.0
    %944 = vadd.xlane.f32.xlu0 %v943
    %v945 = vpop.xlane.xlu0 %944
    %v946 = vsel %vm846, %v914, 0.0
    %947 = vadd.xlane.f32.xlu0 %v946
    %v948 = vpop.xlane.xlu0 %947
    %v949 = vsel %vm846, %v916, 0.0
    %950 = vadd.xlane.f32.xlu0 %v949
    %v951 = vpop.xlane.xlu0 %950
    %v952 = vsel %vm846, %v918, 0.0
    %953 = vadd.xlane.f32.xlu0 %v952
    %v954 = vpop.xlane.xlu0 %953
    %v955 = vsel %vm846, %v920, 0.0
    %956 = vadd.xlane.f32.xlu0 %v955
    %v957 = vpop.xlane.xlu0 %956
    %v958 = vsel %vm846, %v922, 0.0
    %959 = vadd.xlane.f32.xlu0 %v958
    %v960 = vpop.xlane.xlu0 %959
    %v961 = vsel %vm846, %v924, 0.0
    %962 = vadd.xlane.f32.xlu0 %v961
    %v963 = vpop.xlane.xlu0 %962
    %v964 = vsel %vm846, %v926, 0.0
    %965 = vadd.xlane.f32.xlu0 %v964
    %v966 = vpop.xlane.xlu0 %965
    %v967 = vsel %vm846, %v928, 0.0
    %968 = vadd.xlane.f32.xlu0 %v967
    %v969 = vpop.xlane.xlu0 %968
    %v970 = vsel %vm846, %v930, 0.0
    %971 = vadd.xlane.f32.xlu0 %v970
    %v972 = vpop.xlane.xlu0 %971
    %v973 = vsel %vm846, %v932, 0.0
    %974 = vadd.xlane.f32.xlu0 %v973
    %v975 = vpop.xlane.xlu0 %974
    %v976 = vsel %vm846, %v934, 0.0
    %977 = vadd.xlane.f32.xlu0 %v976
    %v978 = vpop.xlane.xlu0 %977
    %v979 = vsel %vm846, %v936, 0.0
    %980 = vadd.xlane.f32.xlu0 %v979
    %v981 = vpop.xlane.xlu0 %980
    %v982 = vsel %vm846, %v938, 0.0
    %983 = vadd.xlane.f32.xlu0 %v982
    %v984 = vpop.xlane.xlu0 %983
    %v985 = vsel %vm846, %v940, 0.0
    %986 = vadd.xlane.f32.xlu0 %v985
    %v987 = vpop.xlane.xlu0 %986
    %v988 = vsel %vm846, %v942, 0.0
    %989 = vadd.xlane.f32.xlu0 %v988
    %v990 = vpop.xlane.xlu0 %989
    %v991 = vrcp.pop %v945
    %v992 = vrcp.pop %v948
    %v993 = vrcp.pop %v951
    %v994 = vrcp.pop %v954
    %v995 = vrcp.pop %v957
    %v996 = vrcp.pop %v960
    %v997 = vrcp.pop %v963
    %v998 = vrcp.pop %v966
    %v999 = vrcp.pop %v969
    %v1000 = vrcp.pop %v972
    %v1001 = vrcp.pop %v975
    %v1002 = vrcp.pop %v978
    %v1003 = vrcp.pop %v981
    %v1004 = vrcp.pop %v984
    %v1005 = vrcp.pop %v987
    %v1006 = vrcp.pop %v990
    %v1007 = vmul.f32 %v912, %v991
    %v1008 = vmul.f32 %v914, %v992
    %v1009 = vmul.f32 %v916, %v993
    %v1010 = vmul.f32 %v918, %v994
    %v1011 = vmul.f32 %v920, %v995
    %v1012 = vmul.f32 %v922, %v996
    %v1013 = vmul.f32 %v924, %v997
    %v1014 = vmul.f32 %v926, %v998
    %v1015 = vmul.f32 %v928, %v999
    %v1016 = vmul.f32 %v930, %v1000
    %v1017 = vmul.f32 %v932, %v1001
    %v1018 = vmul.f32 %v934, %v1002
    %v1019 = vmul.f32 %v936, %v1003
    %v1020 = vmul.f32 %v938, %v1004
    %v1021 = vmul.f32 %v940, %v1005
    %v1022 = vmul.f32 %v942, %v1006
    %v1023 = vpack.c.bf16 %v1007, %v1007
    %v1024 = vpack.c.bf16 %v1008, %v1008
    %v1025 = vpack.c.bf16 %v1009, %v1009
    %v1026 = vpack.c.bf16 %v1010, %v1010
    %v1027 = vpack.c.bf16 %v1011, %v1011
    %v1028 = vpack.c.bf16 %v1012, %v1012
    %v1029 = vpack.c.bf16 %v1013, %v1013
    %v1030 = vpack.c.bf16 %v1014, %v1014
    %v1031 = vpack.c.bf16 %v1015, %v1015
    %v1032 = vpack.c.bf16 %v1016, %v1016
    %v1033 = vpack.c.bf16 %v1017, %v1017
    %v1034 = vpack.c.bf16 %v1018, %v1018
    %v1035 = vpack.c.bf16 %v1019, %v1019
    %v1036 = vpack.c.bf16 %v1020, %v1020
    %v1037 = vpack.c.bf16 %v1021, %v1021
    %v1038 = vpack.c.bf16 %v1022, %v1022
    %vm1039 = vcmask 64512
    %v1041 = vsel %vm1039, %v1023, 0
    %vm1043 = vcmask 1043456
    %v1045 = vsel %vm1043, %v188, 0
    %1047 = vmatpush.bf16.msra.mxu0 0
    %1048 = vmatpush.bf16.msra.mxu0 0
    %1049 = vmatpush.bf16.msra.mxu0 0
    %1050 = vmatpush.bf16.msra.mxu0 0
    %1051 = vmatpush.bf16.msra.mxu0 0
    %1052 = vmatpush.bf16.msra.mxu0 0
    %1053 = vmatpush.bf16.msra.mxu0 0
    %1054 = vmatpush.bf16.msra.mxu0 %v1045
    %1055 = vmatmul.bf16.gmra.mxu0 %v1041
    %v1056 = vpop.f32.mrf.mxu0
    %v1057 = vadd.f32 0.0, %v1056
    %v1058 = vpop.f32.mrf.mxu0
    %1059 = vdwg.mxu0
    %v1061 = vsel %vm1039, %v1024, 0
    %v1064 = vsel %vm1043, %v189, 0
    %1066 = vmatpush.bf16.msra.mxu0 0
    %1067 = vmatpush.bf16.msra.mxu0 0
    %1068 = vmatpush.bf16.msra.mxu0 0
    %1069 = vmatpush.bf16.msra.mxu0 0
    %1070 = vmatpush.bf16.msra.mxu0 0
    %1071 = vmatpush.bf16.msra.mxu0 0
    %1072 = vmatpush.bf16.msra.mxu0 0
    %1073 = vmatpush.bf16.msra.mxu0 %v1064
    %1074 = vmatmul.bf16.gmra.mxu0 %v1061
    %v1075 = vpop.f32.mrf.mxu0
    %v1076 = vadd.f32 0.0, %v1075
    %v1077 = vpop.f32.mrf.mxu0
    %1078 = vdwg.mxu0
    %v1080 = vsel %vm1039, %v1025, 0
    %v1083 = vsel %vm1043, %v190, 0
    %1085 = vmatpush.bf16.msra.mxu0 0
    %1086 = vmatpush.bf16.msra.mxu0 0
    %1087 = vmatpush.bf16.msra.mxu0 0
    %1088 = vmatpush.bf16.msra.mxu0 0
    %1089 = vmatpush.bf16.msra.mxu0 0
    %1090 = vmatpush.bf16.msra.mxu0 0
    %1091 = vmatpush.bf16.msra.mxu0 0
    %1092 = vmatpush.bf16.msra.mxu0 %v1083
    %1093 = vmatmul.bf16.gmra.mxu0 %v1080
    %v1094 = vpop.f32.mrf.mxu0
    %v1095 = vadd.f32 0.0, %v1094
    %v1096 = vpop.f32.mrf.mxu0
    %1097 = vdwg.mxu0
    %v1099 = vsel %vm1039, %v1026, 0
    %v1102 = vsel %vm1043, %v191, 0
    %1104 = vmatpush.bf16.msra.mxu0 0
    %1105 = vmatpush.bf16.msra.mxu0 0
    %1106 = vmatpush.bf16.msra.mxu0 0
    %1107 = vmatpush.bf16.msra.mxu0 0
    %1108 = vmatpush.bf16.msra.mxu0 0
    %1109 = vmatpush.bf16.msra.mxu0 0
    %1110 = vmatpush.bf16.msra.mxu0 0
    %1111 = vmatpush.bf16.msra.mxu0 %v1102
    %1112 = vmatmul.bf16.gmra.mxu0 %v1099
    %v1113 = vpop.f32.mrf.mxu0
    %v1114 = vadd.f32 0.0, %v1113
    %v1115 = vpop.f32.mrf.mxu0
    %1116 = vdwg.mxu0
    %v1118 = vsel %vm1039, %v1027, 0
    %v1121 = vsel %vm1043, %v192, 0
    %1123 = vmatpush.bf16.msra.mxu0 0
    %1124 = vmatpush.bf16.msra.mxu0 0
    %1125 = vmatpush.bf16.msra.mxu0 0
    %1126 = vmatpush.bf16.msra.mxu0 0
    %1127 = vmatpush.bf16.msra.mxu0 0
    %1128 = vmatpush.bf16.msra.mxu0 0
    %1129 = vmatpush.bf16.msra.mxu0 0
    %1130 = vmatpush.bf16.msra.mxu0 %v1121
    %1131 = vmatmul.bf16.gmra.mxu0 %v1118
    %v1132 = vpop.f32.mrf.mxu0
    %v1133 = vadd.f32 0.0, %v1132
    %v1134 = vpop.f32.mrf.mxu0
    %1135 = vdwg.mxu0
    %v1137 = vsel %vm1039, %v1028, 0
    %v1140 = vsel %vm1043, %v193, 0
    %1142 = vmatpush.bf16.msra.mxu0 0
    %1143 = vmatpush.bf16.msra.mxu0 0
    %1144 = vmatpush.bf16.msra.mxu0 0
    %1145 = vmatpush.bf16.msra.mxu0 0
    %1146 = vmatpush.bf16.msra.mxu0 0
    %1147 = vmatpush.bf16.msra.mxu0 0
    %1148 = vmatpush.bf16.msra.mxu0 0
    %1149 = vmatpush.bf16.msra.mxu0 %v1140
    %1150 = vmatmul.bf16.gmra.mxu0 %v1137
    %v1151 = vpop.f32.mrf.mxu0
    %v1152 = vadd.f32 0.0, %v1151
    %v1153 = vpop.f32.mrf.mxu0
    %1154 = vdwg.mxu0
    %v1156 = vsel %vm1039, %v1029, 0
    %v1159 = vsel %vm1043, %v194, 0
    %1161 = vmatpush.bf16.msra.mxu0 0
    %1162 = vmatpush.bf16.msra.mxu0 0
    %1163 = vmatpush.bf16.msra.mxu0 0
    %1164 = vmatpush.bf16.msra.mxu0 0
    %1165 = vmatpush.bf16.msra.mxu0 0
    %1166 = vmatpush.bf16.msra.mxu0 0
    %1167 = vmatpush.bf16.msra.mxu0 0
    %1168 = vmatpush.bf16.msra.mxu0 %v1159
    %1169 = vmatmul.bf16.gmra.mxu0 %v1156
    %v1170 = vpop.f32.mrf.mxu0
    %v1171 = vadd.f32 0.0, %v1170
    %v1172 = vpop.f32.mrf.mxu0
    %1173 = vdwg.mxu0
    %v1175 = vsel %vm1039, %v1030, 0
    %v1178 = vsel %vm1043, %v195, 0
    %1180 = vmatpush.bf16.msra.mxu0 0
    %1181 = vmatpush.bf16.msra.mxu0 0
    %1182 = vmatpush.bf16.msra.mxu0 0
    %1183 = vmatpush.bf16.msra.mxu0 0
    %1184 = vmatpush.bf16.msra.mxu0 0
    %1185 = vmatpush.bf16.msra.mxu0 0
    %1186 = vmatpush.bf16.msra.mxu0 0
    %1187 = vmatpush.bf16.msra.mxu0 %v1178
    %1188 = vmatmul.bf16.gmra.mxu0 %v1175
    %v1189 = vpop.f32.mrf.mxu0
    %v1190 = vadd.f32 0.0, %v1189
    %v1191 = vpop.f32.mrf.mxu0
    %1192 = vdwg.mxu0
    %v1194 = vsel %vm1039, %v1031, 0
    %v1197 = vsel %vm1043, %v196, 0
    %1199 = vmatpush.bf16.msra.mxu0 0
    %1200 = vmatpush.bf16.msra.mxu0 0
    %1201 = vmatpush.bf16.msra.mxu0 0
    %1202 = vmatpush.bf16.msra.mxu0 0
    %1203 = vmatpush.bf16.msra.mxu0 0
    %1204 = vmatpush.bf16.msra.mxu0 0
    %1205 = vmatpush.bf16.msra.mxu0 0
    %1206 = vmatpush.bf16.msra.mxu0 %v1197
    %1207 = vmatmul.bf16.gmra.mxu0 %v1194
    %v1208 = vpop.f32.mrf.mxu0
    %v1209 = vadd.f32 0.0, %v1208
    %v1210 = vpop.f32.mrf.mxu0
    %1211 = vdwg.mxu0
    %v1213 = vsel %vm1039, %v1032, 0
    %v1216 = vsel %vm1043, %v197, 0
    %1218 = vmatpush.bf16.msra.mxu0 0
    %1219 = vmatpush.bf16.msra.mxu0 0
    %1220 = vmatpush.bf16.msra.mxu0 0
    %1221 = vmatpush.bf16.msra.mxu0 0
    %1222 = vmatpush.bf16.msra.mxu0 0
    %1223 = vmatpush.bf16.msra.mxu0 0
    %1224 = vmatpush.bf16.msra.mxu0 0
    %1225 = vmatpush.bf16.msra.mxu0 %v1216
    %1226 = vmatmul.bf16.gmra.mxu0 %v1213
    %v1227 = vpop.f32.mrf.mxu0
    %v1228 = vadd.f32 0.0, %v1227
    %v1229 = vpop.f32.mrf.mxu0
    %1230 = vdwg.mxu0
    %v1232 = vsel %vm1039, %v1033, 0
    %v1235 = vsel %vm1043, %v198, 0
    %1237 = vmatpush.bf16.msra.mxu0 0
    %1238 = vmatpush.bf16.msra.mxu0 0
    %1239 = vmatpush.bf16.msra.mxu0 0
    %1240 = vmatpush.bf16.msra.mxu0 0
    %1241 = vmatpush.bf16.msra.mxu0 0
    %1242 = vmatpush.bf16.msra.mxu0 0
    %1243 = vmatpush.bf16.msra.mxu0 0
    %1244 = vmatpush.bf16.msra.mxu0 %v1235
    %1245 = vmatmul.bf16.gmra.mxu0 %v1232
    %v1246 = vpop.f32.mrf.mxu0
    %v1247 = vadd.f32 0.0, %v1246
    %v1248 = vpop.f32.mrf.mxu0
    %1249 = vdwg.mxu0
    %v1251 = vsel %vm1039, %v1034, 0
    %v1254 = vsel %vm1043, %v199, 0
    %1256 = vmatpush.bf16.msra.mxu0 0
    %1257 = vmatpush.bf16.msra.mxu0 0
    %1258 = vmatpush.bf16.msra.mxu0 0
    %1259 = vmatpush.bf16.msra.mxu0 0
    %1260 = vmatpush.bf16.msra.mxu0 0
    %1261 = vmatpush.bf16.msra.mxu0 0
    %1262 = vmatpush.bf16.msra.mxu0 0
    %1263 = vmatpush.bf16.msra.mxu0 %v1254
    %1264 = vmatmul.bf16.gmra.mxu0 %v1251
    %v1265 = vpop.f32.mrf.mxu0
    %v1266 = vadd.f32 0.0, %v1265
    %v1267 = vpop.f32.mrf.mxu0
    %1268 = vdwg.mxu0
    %v1270 = vsel %vm1039, %v1035, 0
    %v1273 = vsel %vm1043, %v200, 0
    %1275 = vmatpush.bf16.msra.mxu0 0
    %1276 = vmatpush.bf16.msra.mxu0 0
    %1277 = vmatpush.bf16.msra.mxu0 0
    %1278 = vmatpush.bf16.msra.mxu0 0
    %1279 = vmatpush.bf16.msra.mxu0 0
    %1280 = vmatpush.bf16.msra.mxu0 0
    %1281 = vmatpush.bf16.msra.mxu0 0
    %1282 = vmatpush.bf16.msra.mxu0 %v1273
    %1283 = vmatmul.bf16.gmra.mxu0 %v1270
    %v1284 = vpop.f32.mrf.mxu0
    %v1285 = vadd.f32 0.0, %v1284
    %v1286 = vpop.f32.mrf.mxu0
    %1287 = vdwg.mxu0
    %v1289 = vsel %vm1039, %v1036, 0
    %v1292 = vsel %vm1043, %v201, 0
    %1294 = vmatpush.bf16.msra.mxu0 0
    %1295 = vmatpush.bf16.msra.mxu0 0
    %1296 = vmatpush.bf16.msra.mxu0 0
    %1297 = vmatpush.bf16.msra.mxu0 0
    %1298 = vmatpush.bf16.msra.mxu0 0
    %1299 = vmatpush.bf16.msra.mxu0 0
    %1300 = vmatpush.bf16.msra.mxu0 0
    %1301 = vmatpush.bf16.msra.mxu0 %v1292
    %1302 = vmatmul.bf16.gmra.mxu0 %v1289
    %v1303 = vpop.f32.mrf.mxu0
    %v1304 = vadd.f32 0.0, %v1303
    %v1305 = vpop.f32.mrf.mxu0
    %1306 = vdwg.mxu0
    %v1308 = vsel %vm1039, %v1037, 0
    %v1311 = vsel %vm1043, %v202, 0
    %1313 = vmatpush.bf16.msra.mxu0 0
    %1314 = vmatpush.bf16.msra.mxu0 0
    %1315 = vmatpush.bf16.msra.mxu0 0
    %1316 = vmatpush.bf16.msra.mxu0 0
    %1317 = vmatpush.bf16.msra.mxu0 0
    %1318 = vmatpush.bf16.msra.mxu0 0
    %1319 = vmatpush.bf16.msra.mxu0 0
    %1320 = vmatpush.bf16.msra.mxu0 %v1311
    %1321 = vmatmul.bf16.gmra.mxu0 %v1308
    %v1322 = vpop.f32.mrf.mxu0
    %v1323 = vadd.f32 0.0, %v1322
    %v1324 = vpop.f32.mrf.mxu0
    %1325 = vdwg.mxu0
    %v1327 = vsel %vm1039, %v1038, 0
    %v1330 = vsel %vm1043, %v203, 0
    %1332 = vmatpush.bf16.msra.mxu0 0
    %1333 = vmatpush.bf16.msra.mxu0 0
    %1334 = vmatpush.bf16.msra.mxu0 0
    %1335 = vmatpush.bf16.msra.mxu0 0
    %1336 = vmatpush.bf16.msra.mxu0 0
    %1337 = vmatpush.bf16.msra.mxu0 0
    %1338 = vmatpush.bf16.msra.mxu0 0
    %1339 = vmatpush.bf16.msra.mxu0 %v1330
    %1340 = vmatmul.bf16.gmra.mxu0 %v1327
    %v1341 = vpop.f32.mrf.mxu0
    %v1342 = vadd.f32 0.0, %v1341
    %v1343 = vpop.f32.mrf.mxu0
    %1344 = vdwg.mxu0
    %v1345 = vld [vmem:[%s4] sm:$0xf]
    %v1346 = vmul.f32 %v1057, %v1345
    %v1347 = vmul.f32 %v1076, %v1345
    %v1348 = vmul.f32 %v1095, %v1345
    %v1349 = vmul.f32 %v1114, %v1345
    %v1350 = vmul.f32 %v1133, %v1345
    %v1351 = vmul.f32 %v1152, %v1345
    %v1352 = vmul.f32 %v1171, %v1345
    %v1353 = vmul.f32 %v1190, %v1345
    %v1354 = vmul.f32 %v1209, %v1345
    %v1355 = vmul.f32 %v1228, %v1345
    %v1356 = vmul.f32 %v1247, %v1345
    %v1357 = vmul.f32 %v1266, %v1345
    %v1358 = vmul.f32 %v1285, %v1345
    %v1359 = vmul.f32 %v1304, %v1345
    %v1360 = vmul.f32 %v1323, %v1345
    %v1361 = vmul.f32 %v1342, %v1345
    %vm1362 = vcmask 257024
    %v1363 = vsel %vm1362, %v1346, 0.0
    %v1364 = vrot.slane %v1363, 4
    %v1365 = vadd.f32 %v1363, %v1364
    %v1366 = vrot.slane %v1365, 2
    %v1367 = vadd.f32 %v1365, %v1366
    %v1368 = vrot.slane %v1367, 1
    %v1369 = vadd.f32 %v1367, %v1368
    %v1370 = vsel %vm1362, %v1347, 0.0
    %v1371 = vrot.slane %v1370, 4
    %v1372 = vadd.f32 %v1370, %v1371
    %v1373 = vrot.slane %v1372, 2
    %v1374 = vadd.f32 %v1372, %v1373
    %v1375 = vrot.slane %v1374, 1
    %v1376 = vadd.f32 %v1374, %v1375
    %v1377 = vsel %vm1362, %v1348, 0.0
    %v1378 = vrot.slane %v1377, 4
    %v1379 = vadd.f32 %v1377, %v1378
    %v1380 = vrot.slane %v1379, 2
    %v1381 = vadd.f32 %v1379, %v1380
    %v1382 = vrot.slane %v1381, 1
    %v1383 = vadd.f32 %v1381, %v1382
    %v1384 = vsel %vm1362, %v1349, 0.0
    %v1385 = vrot.slane %v1384, 4
    %v1386 = vadd.f32 %v1384, %v1385
    %v1387 = vrot.slane %v1386, 2
    %v1388 = vadd.f32 %v1386, %v1387
    %v1389 = vrot.slane %v1388, 1
    %v1390 = vadd.f32 %v1388, %v1389
    %v1391 = vsel %vm1362, %v1350, 0.0
    %v1392 = vrot.slane %v1391, 4
    %v1393 = vadd.f32 %v1391, %v1392
    %v1394 = vrot.slane %v1393, 2
    %v1395 = vadd.f32 %v1393, %v1394
    %v1396 = vrot.slane %v1395, 1
    %v1397 = vadd.f32 %v1395, %v1396
    %v1398 = vsel %vm1362, %v1351, 0.0
    %v1399 = vrot.slane %v1398, 4
    %v1400 = vadd.f32 %v1398, %v1399
    %v1401 = vrot.slane %v1400, 2
    %v1402 = vadd.f32 %v1400, %v1401
    %v1403 = vrot.slane %v1402, 1
    %v1404 = vadd.f32 %v1402, %v1403
    %v1405 = vsel %vm1362, %v1352, 0.0
    %v1406 = vrot.slane %v1405, 4
    %v1407 = vadd.f32 %v1405, %v1406
    %v1408 = vrot.slane %v1407, 2
    %v1409 = vadd.f32 %v1407, %v1408
    %v1410 = vrot.slane %v1409, 1
    %v1411 = vadd.f32 %v1409, %v1410
    %v1412 = vsel %vm1362, %v1353, 0.0
    %v1413 = vrot.slane %v1412, 4
    %v1414 = vadd.f32 %v1412, %v1413
    %v1415 = vrot.slane %v1414, 2
    %v1416 = vadd.f32 %v1414, %v1415
    %v1417 = vrot.slane %v1416, 1
    %v1418 = vadd.f32 %v1416, %v1417
    %v1419 = vsel %vm1362, %v1354, 0.0
    %v1420 = vrot.slane %v1419, 4
    %v1421 = vadd.f32 %v1419, %v1420
    %v1422 = vrot.slane %v1421, 2
    %v1423 = vadd.f32 %v1421, %v1422
    %v1424 = vrot.slane %v1423, 1
    %v1425 = vadd.f32 %v1423, %v1424
    %v1426 = vsel %vm1362, %v1355, 0.0
    %v1427 = vrot.slane %v1426, 4
    %v1428 = vadd.f32 %v1426, %v1427
    %v1429 = vrot.slane %v1428, 2
    %v1430 = vadd.f32 %v1428, %v1429
    %v1431 = vrot.slane %v1430, 1
    %v1432 = vadd.f32 %v1430, %v1431
    %v1433 = vsel %vm1362, %v1356, 0.0
    %v1434 = vrot.slane %v1433, 4
    %v1435 = vadd.f32 %v1433, %v1434
    %v1436 = vrot.slane %v1435, 2
    %v1437 = vadd.f32 %v1435, %v1436
    %v1438 = vrot.slane %v1437, 1
    %v1439 = vadd.f32 %v1437, %v1438
    %v1440 = vsel %vm1362, %v1357, 0.0
    %v1441 = vrot.slane %v1440, 4
    %v1442 = vadd.f32 %v1440, %v1441
    %v1443 = vrot.slane %v1442, 2
    %v1444 = vadd.f32 %v1442, %v1443
    %v1445 = vrot.slane %v1444, 1
    %v1446 = vadd.f32 %v1444, %v1445
    %v1447 = vsel %vm1362, %v1358, 0.0
    %v1448 = vrot.slane %v1447, 4
    %v1449 = vadd.f32 %v1447, %v1448
    %v1450 = vrot.slane %v1449, 2
    %v1451 = vadd.f32 %v1449, %v1450
    %v1452 = vrot.slane %v1451, 1
    %v1453 = vadd.f32 %v1451, %v1452
    %v1454 = vsel %vm1362, %v1359, 0.0
    %v1455 = vrot.slane %v1454, 4
    %v1456 = vadd.f32 %v1454, %v1455
    %v1457 = vrot.slane %v1456, 2
    %v1458 = vadd.f32 %v1456, %v1457
    %v1459 = vrot.slane %v1458, 1
    %v1460 = vadd.f32 %v1458, %v1459
    %v1461 = vsel %vm1362, %v1360, 0.0
    %v1462 = vrot.slane %v1461, 4
    %v1463 = vadd.f32 %v1461, %v1462
    %v1464 = vrot.slane %v1463, 2
    %v1465 = vadd.f32 %v1463, %v1464
    %v1466 = vrot.slane %v1465, 1
    %v1467 = vadd.f32 %v1465, %v1466
    %v1468 = vsel %vm1362, %v1361, 0.0
    %v1469 = vrot.slane %v1468, 4
    %v1470 = vadd.f32 %v1468, %v1469
    %v1471 = vrot.slane %v1470, 2
    %v1472 = vadd.f32 %v1470, %v1471
    %v1473 = vrot.slane %v1472, 1
    %v1474 = vadd.f32 %v1472, %v1473
    %vm1491 = vcmask 1041409
    %v1492 = vsel %vm1491, %v1376, %v1369
    %vm1493 = vcmask 1042434
    %v1494 = vsel %vm1493, %v1383, %v1492
    %vm1495 = vcmask 1043459
    %v1496 = vsel %vm1495, %v1390, %v1494
    %vm1497 = vcmask 1044484
    %v1498 = vsel %vm1497, %v1397, %v1496
    %vm1499 = vcmask 1045509
    %v1500 = vsel %vm1499, %v1404, %v1498
    %vm1501 = vcmask 1046534
    %v1502 = vsel %vm1501, %v1411, %v1500
    %vm1503 = vcmask 1047559
    %v1504 = vsel %vm1503, %v1418, %v1502
    %v1505 = vsel %vm1491, %v1432, %v1425
    %v1506 = vsel %vm1493, %v1439, %v1505
    %v1507 = vsel %vm1495, %v1446, %v1506
    %v1508 = vsel %vm1497, %v1453, %v1507
    %v1509 = vsel %vm1499, %v1460, %v1508
    %v1510 = vsel %vm1501, %v1467, %v1509
    %v1511 = vsel %vm1503, %v1474, %v1510
    %1514 = vst.msk [vmem:[#allocation5] sm:$0xff] %vm114, %v1504
    %1515 = vst.msk [vmem:[#allocation5 + $0x8] sm:$0xff] %vm114, %v1511
    // Predicated region
    $region26: #{tpu_custom_call.1} parent=1 // pred_check
      _
    $region27: #{tpu_custom_call.1} parent=1 // pred_check_branch
      %1517 = sbr.rel (0) target = $region29
    $region28: #{tpu_custom_call.1} parent=1 // pred_region
      %1519 = vsyncadd [#allocation4], 0
      %s1520 = sshll.u32 [#allocation5], 4
      %s1521 = int_to_ptr.vmem [resolvable:$true] %s1520
      %s1522 = sshll.u32 %s5, 4
      %s1523 = int_to_ptr.hbm [resolvable:$true] %s1522
      %1528 = dma.vmem_to_hbm [thread:$0]  %s1521, 256, %s1523, [#allocation4], 128, 128, 8
    $region29: #{tpu_custom_call.1} parent=1 // pred_fallthru
      _
    // Predicated region
    $region30: #{tpu_custom_call.1} parent=1 // pred_check
      _
    $region31: #{tpu_custom_call.1} parent=1 // pred_check_branch
      %1530 = sbr.rel (0) target = $region33
    $region32: #{tpu_custom_call.1} parent=1 // pred_region
      %1532 = dma.done [#allocation4], 256
    $region33: #{tpu_custom_call.1} parent=1 // pred_fallthru
      _
    %1533 = vsyncpa [#allocation3], 1
    %1534 = vsyncpa [#allocation4], 1

// kernel: tpu_custom_call.1
$region0: #{tpu_custom_call.1}
  #allocation0 [shape = 'u32[]', space=smem, size = 0x4, offset = 0x4, fixed_abs, tag = 'smem constant byte address 0x4 - core index']
  #allocation1 [shape = 'u32[72,128]{1,0:T(1,128)}', space=vmem, size = 0x9000, scoped, tag = 'internal scratch']
  %s0 = inlined_call_operand.hbm [shape: bf16[16,8,32], index: 0, kind: input, shape index: {}]
  %s1 = inlined_call_operand.vmem [shape: f32[16,8], index: 1, kind: input, shape index: {}]
  %s2 = inlined_call_operand.vmem [shape: bf16[32,128], index: 2, kind: input, shape index: {}]
  %s3 = inlined_call_operand.vmem [shape: f32[1,128], index: 3, kind: input, shape index: {}]
  %s4 = inlined_call_operand.vmem [shape: f32[4,32], index: 4, kind: input, shape index: {}]
  %s5 = inlined_call_operand.hbm [shape: f32[16,32], index: 5, kind: output, shape index: {}]
  %s6 = sld [smem:[#allocation0]]
  $region34: #{tpu_custom_call.1} parent=0
    _
  %s8 = ssub.s32 1, %s6
  %s9 = scalar_select 0, %s8, %s6
  $region1: #{tpu_custom_call.1} parent=0
    #allocation2 [shape = 'u8[32768]{0}', space=vmem, size = 0x8000, scoped, tag = 'input window, operand 0, single buffered']
    #allocation3 [shape = 's32[1]{0}', space=sflag, size = 0x4, scoped, tag = 'scoped memory for tpu_custom_call.1']
    #allocation4 [shape = 's32[1]{0}', space=sflag, size = 0x4, scoped, tag = 'scoped memory for tpu_custom_call.1']
    #allocation5 [shape = 'u8[8192]{0}', space=vmem, size = 0x2000, scoped, tag = 'output window, operand 0, single buffered']
    %10 = vsyncpa [#allocation3], 0
    %11 = vsyncpa [#allocation4], 0
    // Predicated region
    $region2: #{tpu_custom_call.1} parent=1 // pred_check
      _
    $region3: #{tpu_custom_call.1} parent=1 // pred_check_branch
      %13 = sbr.rel (0) target = $region5
    $region4: #{tpu_custom_call.1} parent=1 // pred_region
      %15 = vsyncadd [#allocation3], 0
      %s16 = sshll.u32 %s0, 4
      %s17 = int_to_ptr.hbm [resolvable:$true] %s16
      %s18 = sshll.u32 [#allocation2], 4
      %s19 = int_to_ptr.vmem [resolvable:$true] %s18
      %24 = dma.hbm_to_vmem [thread:$0]  %s17, 1024, %s19, [#allocation3], 64, 64, 4
    $region5: #{tpu_custom_call.1} parent=1 // pred_fallthru
      _
    // Predicated region
    $region6: #{tpu_custom_call.1} parent=1 // pred_check
      _
    $region7: #{tpu_custom_call.1} parent=1 // pred_check_branch
      %26 = sbr.rel (0) target = $region9
    $region8: #{tpu_custom_call.1} parent=1 // pred_region
      _
    $region9: #{tpu_custom_call.1} parent=1 // pred_fallthru
      _
    // Predicated region
    $region10: #{tpu_custom_call.1} parent=1 // pred_check
      _
    $region11: #{tpu_custom_call.1} parent=1 // pred_check_branch
      %28 = sbr.rel (0) target = $region13
    $region12: #{tpu_custom_call.1} parent=1 // pred_region
      _
    $region13: #{tpu_custom_call.1} parent=1 // pred_fallthru
      _
    // Predicated region
    $region14: #{tpu_custom_call.1} parent=1 // pred_check
      _
    $region15: #{tpu_custom_call.1} parent=1 // pred_check_branch
      %30 = sbr.rel (0) target = $region17
    $region16: #{tpu_custom_call.1} parent=1 // pred_region
      _
    $region17: #{tpu_custom_call.1} parent=1 // pred_fallthru
      _
    // Predicated region
    $region18: #{tpu_custom_call.1} parent=1 // pred_check
      _
    $region19: #{tpu_custom_call.1} parent=1 // pred_check_branch
      %32 = sbr.rel (0) target = $region21
    $region20: #{tpu_custom_call.1} parent=1 // pred_region
      _
    $region21: #{tpu_custom_call.1} parent=1 // pred_fallthru
      _
    // Predicated region
    $region22: #{tpu_custom_call.1} parent=1 // pred_check
      _
    $region23: #{tpu_custom_call.1} parent=1 // pred_check_branch
      %34 = sbr.rel (0) target = $region25
    $region24: #{tpu_custom_call.1} parent=1 // pred_region
      %36 = dma.done [#allocation3], 1024
    $region25: #{tpu_custom_call.1} parent=1 // pred_fallthru
      _
    %v38 = vld [vmem:[#allocation2] sm:$0xf]
    %v39 = vld [vmem:[#allocation2 + $0x4] sm:$0xf]
    %v40 = vld [vmem:[#allocation2 + $0x8] sm:$0xf]
    %v41 = vld [vmem:[#allocation2 + $0xc] sm:$0xf]
    %v42 = vld [vmem:[#allocation2 + $0x10] sm:$0xf]
    %v43 = vld [vmem:[#allocation2 + $0x14] sm:$0xf]
    %v44 = vld [vmem:[#allocation2 + $0x18] sm:$0xf]
    %v45 = vld [vmem:[#allocation2 + $0x1c] sm:$0xf]
    %v46 = vld [vmem:[#allocation2 + $0x20] sm:$0xf]
    %v47 = vld [vmem:[#allocation2 + $0x24] sm:$0xf]
    %v48 = vld [vmem:[#allocation2 + $0x28] sm:$0xf]
    %v49 = vld [vmem:[#allocation2 + $0x2c] sm:$0xf]
    %v50 = vld [vmem:[#allocation2 + $0x30] sm:$0xf]
    %v51 = vld [vmem:[#allocation2 + $0x34] sm:$0xf]
    %v52 = vld [vmem:[#allocation2 + $0x38] sm:$0xf]
    %v53 = vld [vmem:[#allocation2 + $0x3c] sm:$0xf]
    %v54 = vld [vmem:[%s2] sm:$0xf]
    %v55 = vld [vmem:[%s2 + $0x4] sm:$0xf]
    %v56 = vld [vmem:[%s2 + $0x8] sm:$0xf]
    %v57 = vld [vmem:[%s2 + $0xc] sm:$0xf]
    %v58 = vld [vmem:[%s3] sm:$0x1]
    %v60 = vperm.slane %v58, 0
    %v78 = vunpack.c.l.b16 %v38
    %v79 = vunpack.c.l.b16 %v39
    %v80 = vunpack.c.l.b16 %v40
    %v81 = vunpack.c.l.b16 %v41
    %v82 = vunpack.c.l.b16 %v42
    %v83 = vunpack.c.l.b16 %v43
    %v84 = vunpack.c.l.b16 %v44
    %v85 = vunpack.c.l.b16 %v45
    %v86 = vunpack.c.l.b16 %v46
    %v87 = vunpack.c.l.b16 %v47
    %v88 = vunpack.c.l.b16 %v48
    %v89 = vunpack.c.l.b16 %v49
    %v90 = vunpack.c.l.b16 %v50
    %v91 = vunpack.c.l.b16 %v51
    %v92 = vunpack.c.l.b16 %v52
    %v93 = vunpack.c.l.b16 %v53
    %v94 = vpack.c.b16 %v79, %v78
    %v95 = vpack.c.b16 %v81, %v80
    %v96 = vpack.c.b16 %v83, %v82
    %v97 = vpack.c.b16 %v85, %v84
    %v98 = vpack.c.b16 %v87, %v86
    %v99 = vpack.c.b16 %v89, %v88
    %v100 = vpack.c.b16 %v91, %v90
    %v101 = vpack.c.b16 %v93, %v92
    %v106 = vunpack.c.l.b16 %v54
    %v107 = vunpack.c.l.b16 %v55
    %v108 = vunpack.c.l.b16 %v56
    %v109 = vunpack.c.l.b16 %v57
    %v110 = vpack.c.b16 %v107, %v106
    %v111 = vpack.c.b16 %v109, %v108
    %vm114 = vcmask 261120
    %v116 = vsel %vm114, %v94, 0
    %v119 = vsel %vm114, %v95, 0
    %v122 = vsel %vm114, %v96, 0
    %v125 = vsel %vm114, %v97, 0
    %v128 = vsel %vm114, %v98, 0
    %v131 = vsel %vm114, %v99, 0
    %v134 = vsel %vm114, %v100, 0
    %v137 = vsel %vm114, %v101, 0
    %139 = vmatpush.bf16.msra.mxu0 0
    %140 = vmatpush.bf16.msra.mxu0 0
    %141 = vmatpush.bf16.msra.mxu0 0
    %142 = vmatpush.bf16.msra.mxu0 0
    %143 = vmatpush.bf16.msra.mxu0 0
    %144 = vmatpush.bf16.msra.mxu0 0
    %145 = vmatpush.bf16.msra.mxu0 %v111
    %146 = vmatpush.bf16.msra.mxu0 %v110
    %147 = vmatmul.bf16.gmra.mxu0 %v116
    %v148 = vpop.f32.mrf.mxu0
    %v149 = vadd.f32 %v60, %v148
    %v150 = vpop.f32.mrf.mxu0
    %v151 = vadd.f32 %v60, %v150
    %152 = vmatmul.bf16.gmra.mxu0 %v119
    %v153 = vpop.f32.mrf.mxu0
    %v154 = vadd.f32 %v60, %v153
    %v155 = vpop.f32.mrf.mxu0
    %v156 = vadd.f32 %v60, %v155
    %157 = vmatmul.bf16.gmra.mxu0 %v122
    %v158 = vpop.f32.mrf.mxu0
    %v159 = vadd.f32 %v60, %v158
    %v160 = vpop.f32.mrf.mxu0
    %v161 = vadd.f32 %v60, %v160
    %162 = vmatmul.bf16.gmra.mxu0 %v125
    %v163 = vpop.f32.mrf.mxu0
    %v164 = vadd.f32 %v60, %v163
    %v165 = vpop.f32.mrf.mxu0
    %v166 = vadd.f32 %v60, %v165
    %167 = vmatmul.bf16.gmra.mxu0 %v128
    %v168 = vpop.f32.mrf.mxu0
    %v169 = vadd.f32 %v60, %v168
    %v170 = vpop.f32.mrf.mxu0
    %v171 = vadd.f32 %v60, %v170
    %172 = vmatmul.bf16.gmra.mxu0 %v131
    %v173 = vpop.f32.mrf.mxu0
    %v174 = vadd.f32 %v60, %v173
    %v175 = vpop.f32.mrf.mxu0
    %v176 = vadd.f32 %v60, %v175
    %177 = vmatmul.bf16.gmra.mxu0 %v134
    %v178 = vpop.f32.mrf.mxu0
    %v179 = vadd.f32 %v60, %v178
    %v180 = vpop.f32.mrf.mxu0
    %v181 = vadd.f32 %v60, %v180
    %182 = vmatmul.bf16.gmra.mxu0 %v137
    %v183 = vpop.f32.mrf.mxu0
    %v184 = vadd.f32 %v60, %v183
    %v185 = vpop.f32.mrf.mxu0
    %v186 = vadd.f32 %v60, %v185
    %187 = vdwg.mxu0
    %v188 = vpack.c.bf16 %v149, %v149
    %v189 = vpack.c.bf16 %v151, %v151
    %v190 = vpack.c.bf16 %v154, %v154
    %v191 = vpack.c.bf16 %v156, %v156
    %v192 = vpack.c.bf16 %v159, %v159
    %v193 = vpack.c.bf16 %v161, %v161
    %v194 = vpack.c.bf16 %v164, %v164
    %v195 = vpack.c.bf16 %v166, %v166
    %v196 = vpack.c.bf16 %v169, %v169
    %v197 = vpack.c.bf16 %v171, %v171
    %v198 = vpack.c.bf16 %v174, %v174
    %v199 = vpack.c.bf16 %v176, %v176
    %v200 = vpack.c.bf16 %v179, %v179
    %v201 = vpack.c.bf16 %v181, %v181
    %v202 = vpack.c.bf16 %v184, %v184
    %v203 = vpack.c.bf16 %v186, %v186
    %220 = vrot.lane.b32.xlu0 %v149, 96
    %v221 = vpop.permute.xlu0 %220
    %222 = vrot.lane.b32.xlu0 %v151, 96
    %v223 = vpop.permute.xlu0 %222
    %224 = vrot.lane.b32.xlu0 %v154, 96
    %v225 = vpop.permute.xlu0 %224
    %226 = vrot.lane.b32.xlu0 %v156, 96
    %v227 = vpop.permute.xlu0 %226
    %228 = vrot.lane.b32.xlu0 %v159, 96
    %v229 = vpop.permute.xlu0 %228
    %230 = vrot.lane.b32.xlu0 %v161, 96
    %v231 = vpop.permute.xlu0 %230
    %232 = vrot.lane.b32.xlu0 %v164, 96
    %v233 = vpop.permute.xlu0 %232
    %234 = vrot.lane.b32.xlu0 %v166, 96
    %v235 = vpop.permute.xlu0 %234
    %236 = vrot.lane.b32.xlu0 %v169, 96
    %v237 = vpop.permute.xlu0 %236
    %238 = vrot.lane.b32.xlu0 %v171, 96
    %v239 = vpop.permute.xlu0 %238
    %240 = vrot.lane.b32.xlu0 %v174, 96
    %v241 = vpop.permute.xlu0 %240
    %242 = vrot.lane.b32.xlu0 %v176, 96
    %v243 = vpop.permute.xlu0 %242
    %244 = vrot.lane.b32.xlu0 %v179, 96
    %v245 = vpop.permute.xlu0 %244
    %246 = vrot.lane.b32.xlu0 %v181, 96
    %v247 = vpop.permute.xlu0 %246
    %248 = vrot.lane.b32.xlu0 %v184, 96
    %v249 = vpop.permute.xlu0 %248
    %250 = vrot.lane.b32.xlu0 %v186, 96
    %v251 = vpop.permute.xlu0 %250
    %268 = vxpose.xlu0.b32.start [1/16] %v221, 128
    %269 = vxpose.xlu0.b32.cont [2/16] 0.0, 128
    %270 = vxpose.xlu0.b32.cont [3/16] 0.0, 128
    %271 = vxpose.xlu0.b32.cont [4/16] 0.0, 128
    %272 = vxpose.xlu0.b32.cont [5/16] 0.0, 128
    %273 = vxpose.xlu0.b32.cont [6/16] 0.0, 128
    %274 = vxpose.xlu0.b32.cont [7/16] 0.0, 128
    %275 = vxpose.xlu0.b32.cont [8/16] 0.0, 128
    %276 = vxpose.xlu0.b32.cont [9/16] 0.0, 128
    %277 = vxpose.xlu0.b32.cont [10/16] 0.0, 128
    %278 = vxpose.xlu0.b32.cont [11/16] 0.0, 128
    %279 = vxpose.xlu0.b32.cont [12/16] 0.0, 128
    %280 = vxpose.xlu0.b32.cont [13/16] 0.0, 128
    %281 = vxpose.xlu0.b32.cont [14/16] 0.0, 128
    %282 = vxpose.xlu0.b32.cont [15/16] 0.0, 128
    %283 = vxpose.xlu0.b32.end [16/16] 0.0, 128
    %v284 = vpop.trf.xlu0
    %v285 = vpop.trf.xlu0
    %v286 = vpop.trf.xlu0
    %v287 = vpop.trf.xlu0
    %v288 = vpop.trf.xlu0
    %v289 = vpop.trf.xlu0
    %v290 = vpop.trf.xlu0
    %v291 = vpop.trf.xlu0
    %v292 = vpop.trf.xlu0
    %v293 = vpop.trf.xlu0
    %v294 = vpop.trf.xlu0
    %v295 = vpop.trf.xlu0
    %v296 = vpop.trf.xlu0
    %v297 = vpop.trf.xlu0
    %v298 = vpop.trf.xlu0
    %v299 = vpop.trf.xlu0
    %300 = vxpose.xlu0.b32.start [1/16] %v223, 128
    %301 = vxpose.xlu0.b32.cont [2/16] 0.0, 128
    %302 = vxpose.xlu0.b32.cont [3/16] 0.0, 128
    %303 = vxpose.xlu0.b32.cont [4/16] 0.0, 128
    %304 = vxpose.xlu0.b32.cont [5/16] 0.0, 128
    %305 = vxpose.xlu0.b32.cont [6/16] 0.0, 128
    %306 = vxpose.xlu0.b32.cont [7/16] 0.0, 128
    %307 = vxpose.xlu0.b32.cont [8/16] 0.0, 128
    %308 = vxpose.xlu0.b32.cont [9/16] 0.0, 128
    %309 = vxpose.xlu0.b32.cont [10/16] 0.0, 128
    %310 = vxpose.xlu0.b32.cont [11/16] 0.0, 128
    %311 = vxpose.xlu0.b32.cont [12/16] 0.0, 128
    %312 = vxpose.xlu0.b32.cont [13/16] 0.0, 128
    %313 = vxpose.xlu0.b32.cont [14/16] 0.0, 128
    %314 = vxpose.xlu0.b32.cont [15/16] 0.0, 128
    %315 = vxpose.xlu0.b32.end [16/16] 0.0, 128
    %v316 = vpop.trf.xlu0
    %v317 = vpop.trf.xlu0
    %v318 = vpop.trf.xlu0
    %v319 = vpop.trf.xlu0
    %v320 = vpop.trf.xlu0
    %v321 = vpop.trf.xlu0
    %v322 = vpop.trf.xlu0
    %v323 = vpop.trf.xlu0
    %v324 = vpop.trf.xlu0
    %v325 = vpop.trf.xlu0
    %v326 = vpop.trf.xlu0
    %v327 = vpop.trf.xlu0
    %v328 = vpop.trf.xlu0
    %v329 = vpop.trf.xlu0
    %v330 = vpop.trf.xlu0
    %v331 = vpop.trf.xlu0
    %332 = vxpose.xlu0.b32.start [1/16] %v225, 128
    %333 = vxpose.xlu0.b32.cont [2/16] 0.0, 128
    %334 = vxpose.xlu0.b32.cont [3/16] 0.0, 128
    %335 = vxpose.xlu0.b32.cont [4/16] 0.0, 128
    %336 = vxpose.xlu0.b32.cont [5/16] 0.0, 128
    %337 = vxpose.xlu0.b32.cont [6/16] 0.0, 128
    %338 = vxpose.xlu0.b32.cont [7/16] 0.0, 128
    %339 = vxpose.xlu0.b32.cont [8/16] 0.0, 128
    %340 = vxpose.xlu0.b32.cont [9/16] 0.0, 128
    %341 = vxpose.xlu0.b32.cont [10/16] 0.0, 128
    %342 = vxpose.xlu0.b32.cont [11/16] 0.0, 128
    %343 = vxpose.xlu0.b32.cont [12/16] 0.0, 128
    %344 = vxpose.xlu0.b32.cont [13/16] 0.0, 128
    %345 = vxpose.xlu0.b32.cont [14/16] 0.0, 128
    %346 = vxpose.xlu0.b32.cont [15/16] 0.0, 128
    %347 = vxpose.xlu0.b32.end [16/16] 0.0, 128
    %v348 = vpop.trf.xlu0
    %v349 = vpop.trf.xlu0
    %v350 = vpop.trf.xlu0
    %v351 = vpop.trf.xlu0
    %v352 = vpop.trf.xlu0
    %v353 = vpop.trf.xlu0
    %v354 = vpop.trf.xlu0
    %v355 = vpop.trf.xlu0
    %v356 = vpop.trf.xlu0
    %v357 = vpop.trf.xlu0
    %v358 = vpop.trf.xlu0
    %v359 = vpop.trf.xlu0
    %v360 = vpop.trf.xlu0
    %v361 = vpop.trf.xlu0
    %v362 = vpop.trf.xlu0
    %v363 = vpop.trf.xlu0
    %364 = vxpose.xlu0.b32.start [1/16] %v227, 128
    %365 = vxpose.xlu0.b32.cont [2/16] 0.0, 128
    %366 = vxpose.xlu0.b32.cont [3/16] 0.0, 128
    %367 = vxpose.xlu0.b32.cont [4/16] 0.0, 128
    %368 = vxpose.xlu0.b32.cont [5/16] 0.0, 128
    %369 = vxpose.xlu0.b32.cont [6/16] 0.0, 128
    %370 = vxpose.xlu0.b32.cont [7/16] 0.0, 128
    %371 = vxpose.xlu0.b32.cont [8/16] 0.0, 128
    %372 = vxpose.xlu0.b32.cont [9/16] 0.0, 128
    %373 = vxpose.xlu0.b32.cont [10/16] 0.0, 128
    %374 = vxpose.xlu0.b32.cont [11/16] 0.0, 128
    %375 = vxpose.xlu0.b32.cont [12/16] 0.0, 128
    %376 = vxpose.xlu0.b32.cont [13/16] 0.0, 128
    %377 = vxpose.xlu0.b32.cont [14/16] 0.0, 128
    %378 = vxpose.xlu0.b32.cont [15/16] 0.0, 128
    %379 = vxpose.xlu0.b32.end [16/16] 0.0, 128
    %v380 = vpop.trf.xlu0
    %v381 = vpop.trf.xlu0
    %v382 = vpop.trf.xlu0
    %v383 = vpop.trf.xlu0
    %v384 = vpop.trf.xlu0
    %v385 = vpop.trf.xlu0
    %v386 = vpop.trf.xlu0
    %v387 = vpop.trf.xlu0
    %v388 = vpop.trf.xlu0
    %v389 = vpop.trf.xlu0
    %v390 = vpop.trf.xlu0
    %v391 = vpop.trf.xlu0
    %v392 = vpop.trf.xlu0
    %v393 = vpop.trf.xlu0
    %v394 = vpop.trf.xlu0
    %v395 = vpop.trf.xlu0
    %396 = vxpose.xlu0.b32.start [1/16] %v229, 128
    %397 = vxpose.xlu0.b32.cont [2/16] 0.0, 128
    %398 = vxpose.xlu0.b32.cont [3/16] 0.0, 128
    %399 = vxpose.xlu0.b32.cont [4/16] 0.0, 128
    %400 = vxpose.xlu0.b32.cont [5/16] 0.0, 128
    %401 = vxpose.xlu0.b32.cont [6/16] 0.0, 128
    %402 = vxpose.xlu0.b32.cont [7/16] 0.0, 128
    %403 = vxpose.xlu0.b32.cont [8/16] 0.0, 128
    %404 = vxpose.xlu0.b32.cont [9/16] 0.0, 128
    %405 = vxpose.xlu0.b32.cont [10/16] 0.0, 128
    %406 = vxpose.xlu0.b32.cont [11/16] 0.0, 128
    %407 = vxpose.xlu0.b32.cont [12/16] 0.0, 128
    %408 = vxpose.xlu0.b32.cont [13/16] 0.0, 128
    %409 = vxpose.xlu0.b32.cont [14/16] 0.0, 128
    %410 = vxpose.xlu0.b32.cont [15/16] 0.0, 128
    %411 = vxpose.xlu0.b32.end [16/16] 0.0, 128
    %v412 = vpop.trf.xlu0
    %v413 = vpop.trf.xlu0
    %v414 = vpop.trf.xlu0
    %v415 = vpop.trf.xlu0
    %v416 = vpop.trf.xlu0
    %v417 = vpop.trf.xlu0
    %v418 = vpop.trf.xlu0
    %v419 = vpop.trf.xlu0
    %v420 = vpop.trf.xlu0
    %v421 = vpop.trf.xlu0
    %v422 = vpop.trf.xlu0
    %v423 = vpop.trf.xlu0
    %v424 = vpop.trf.xlu0
    %v425 = vpop.trf.xlu0
    %v426 = vpop.trf.xlu0
    %v427 = vpop.trf.xlu0
    %428 = vxpose.xlu0.b32.start [1/16] %v231, 128
    %429 = vxpose.xlu0.b32.cont [2/16] 0.0, 128
    %430 = vxpose.xlu0.b32.cont [3/16] 0.0, 128
    %431 = vxpose.xlu0.b32.cont [4/16] 0.0, 128
    %432 = vxpose.xlu0.b32.cont [5/16] 0.0, 128
    %433 = vxpose.xlu0.b32.cont [6/16] 0.0, 128
    %434 = vxpose.xlu0.b32.cont [7/16] 0.0, 128
    %435 = vxpose.xlu0.b32.cont [8/16] 0.0, 128
    %436 = vxpose.xlu0.b32.cont [9/16] 0.0, 128
    %437 = vxpose.xlu0.b32.cont [10/16] 0.0, 128
    %438 = vxpose.xlu0.b32.cont [11/16] 0.0, 128
    %439 = vxpose.xlu0.b32.cont [12/16] 0.0, 128
    %440 = vxpose.xlu0.b32.cont [13/16] 0.0, 128
    %441 = vxpose.xlu0.b32.cont [14/16] 0.0, 128
    %442 = vxpose.xlu0.b32.cont [15/16] 0.0, 128
    %443 = vxpose.xlu0.b32.end [16/16] 0.0, 128
    %v444 = vpop.trf.xlu0
    %v445 = vpop.trf.xlu0
    %v446 = vpop.trf.xlu0
    %v447 = vpop.trf.xlu0
    %v448 = vpop.trf.xlu0
    %v449 = vpop.trf.xlu0
    %v450 = vpop.trf.xlu0
    %v451 = vpop.trf.xlu0
    %v452 = vpop.trf.xlu0
    %v453 = vpop.trf.xlu0
    %v454 = vpop.trf.xlu0
    %v455 = vpop.trf.xlu0
    %v456 = vpop.trf.xlu0
    %v457 = vpop.trf.xlu0
    %v458 = vpop.trf.xlu0
    %v459 = vpop.trf.xlu0
    %460 = vxpose.xlu0.b32.start [1/16] %v233, 128
    %461 = vxpose.xlu0.b32.cont [2/16] 0.0, 128
    %462 = vxpose.xlu0.b32.cont [3/16] 0.0, 128
    %463 = vxpose.xlu0.b32.cont [4/16] 0.0, 128
    %464 = vxpose.xlu0.b32.cont [5/16] 0.0, 128
    %465 = vxpose.xlu0.b32.cont [6/16] 0.0, 128
    %466 = vxpose.xlu0.b32.cont [7/16] 0.0, 128
    %467 = vxpose.xlu0.b32.cont [8/16] 0.0, 128
    %468 = vxpose.xlu0.b32.cont [9/16] 0.0, 128
    %469 = vxpose.xlu0.b32.cont [10/16] 0.0, 128
    %470 = vxpose.xlu0.b32.cont [11/16] 0.0, 128
    %471 = vxpose.xlu0.b32.cont [12/16] 0.0, 128
    %472 = vxpose.xlu0.b32.cont [13/16] 0.0, 128
    %473 = vxpose.xlu0.b32.cont [14/16] 0.0, 128
    %474 = vxpose.xlu0.b32.cont [15/16] 0.0, 128
    %475 = vxpose.xlu0.b32.end [16/16] 0.0, 128
    %v476 = vpop.trf.xlu0
    %v477 = vpop.trf.xlu0
    %v478 = vpop.trf.xlu0
    %v479 = vpop.trf.xlu0
    %v480 = vpop.trf.xlu0
    %v481 = vpop.trf.xlu0
    %v482 = vpop.trf.xlu0
    %v483 = vpop.trf.xlu0
    %v484 = vpop.trf.xlu0
    %v485 = vpop.trf.xlu0
    %v486 = vpop.trf.xlu0
    %v487 = vpop.trf.xlu0
    %v488 = vpop.trf.xlu0
    %v489 = vpop.trf.xlu0
    %v490 = vpop.trf.xlu0
    %v491 = vpop.trf.xlu0
    %492 = vxpose.xlu0.b32.start [1/16] %v235, 128
    %493 = vxpose.xlu0.b32.cont [2/16] 0.0, 128
    %494 = vxpose.xlu0.b32.cont [3/16] 0.0, 128
    %495 = vxpose.xlu0.b32.cont [4/16] 0.0, 128
    %496 = vxpose.xlu0.b32.cont [5/16] 0.0, 128
    %497 = vxpose.xlu0.b32.cont [6/16] 0.0, 128
    %498 = vxpose.xlu0.b32.cont [7/16] 0.0, 128
    %499 = vxpose.xlu0.b32.cont [8/16] 0.0, 128
    %500 = vxpose.xlu0.b32.cont [9/16] 0.0, 128
    %501 = vxpose.xlu0.b32.cont [10/16] 0.0, 128
    %502 = vxpose.xlu0.b32.cont [11/16] 0.0, 128
    %503 = vxpose.xlu0.b32.cont [12/16] 0.0, 128
    %504 = vxpose.xlu0.b32.cont [13/16] 0.0, 128
    %505 = vxpose.xlu0.b32.cont [14/16] 0.0, 128
    %506 = vxpose.xlu0.b32.cont [15/16] 0.0, 128
    %507 = vxpose.xlu0.b32.end [16/16] 0.0, 128
    %v508 = vpop.trf.xlu0
    %v509 = vpop.trf.xlu0
    %v510 = vpop.trf.xlu0
    %v511 = vpop.trf.xlu0
    %v512 = vpop.trf.xlu0
    %v513 = vpop.trf.xlu0
    %v514 = vpop.trf.xlu0
    %v515 = vpop.trf.xlu0
    %v516 = vpop.trf.xlu0
    %v517 = vpop.trf.xlu0
    %v518 = vpop.trf.xlu0
    %v519 = vpop.trf.xlu0
    %v520 = vpop.trf.xlu0
    %v521 = vpop.trf.xlu0
    %v522 = vpop.trf.xlu0
    %v523 = vpop.trf.xlu0
    %524 = vxpose.xlu0.b32.start [1/16] %v237, 128
    %525 = vxpose.xlu0.b32.cont [2/16] 0.0, 128
    %526 = vxpose.xlu0.b32.cont [3/16] 0.0, 128
    %527 = vxpose.xlu0.b32.cont [4/16] 0.0, 128
    %528 = vxpose.xlu0.b32.cont [5/16] 0.0, 128
    %529 = vxpose.xlu0.b32.cont [6/16] 0.0, 128
    %530 = vxpose.xlu0.b32.cont [7/16] 0.0, 128
    %531 = vxpose.xlu0.b32.cont [8/16] 0.0, 128
    %532 = vxpose.xlu0.b32.cont [9/16] 0.0, 128
    %533 = vxpose.xlu0.b32.cont [10/16] 0.0, 128
    %534 = vxpose.xlu0.b32.cont [11/16] 0.0, 128
    %535 = vxpose.xlu0.b32.cont [12/16] 0.0, 128
    %536 = vxpose.xlu0.b32.cont [13/16] 0.0, 128
    %537 = vxpose.xlu0.b32.cont [14/16] 0.0, 128
    %538 = vxpose.xlu0.b32.cont [15/16] 0.0, 128
    %539 = vxpose.xlu0.b32.end [16/16] 0.0, 128
    %v540 = vpop.trf.xlu0
    %v541 = vpop.trf.xlu0
    %v542 = vpop.trf.xlu0
    %v543 = vpop.trf.xlu0
    %v544 = vpop.trf.xlu0
    %v545 = vpop.trf.xlu0
    %v546 = vpop.trf.xlu0
    %v547 = vpop.trf.xlu0
    %v548 = vpop.trf.xlu0
    %v549 = vpop.trf.xlu0
    %v550 = vpop.trf.xlu0
    %v551 = vpop.trf.xlu0
    %v552 = vpop.trf.xlu0
    %v553 = vpop.trf.xlu0
    %v554 = vpop.trf.xlu0
    %v555 = vpop.trf.xlu0
    %556 = vxpose.xlu0.b32.start [1/16] %v239, 128
    %557 = vxpose.xlu0.b32.cont [2/16] 0.0, 128
    %558 = vxpose.xlu0.b32.cont [3/16] 0.0, 128
    %559 = vxpose.xlu0.b32.cont [4/16] 0.0, 128
    %560 = vxpose.xlu0.b32.cont [5/16] 0.0, 128
    %561 = vxpose.xlu0.b32.cont [6/16] 0.0, 128
    %562 = vxpose.xlu0.b32.cont [7/16] 0.0, 128
    %563 = vxpose.xlu0.b32.cont [8/16] 0.0, 128
    %564 = vxpose.xlu0.b32.cont [9/16] 0.0, 128
    %565 = vxpose.xlu0.b32.cont [10/16] 0.0, 128
    %566 = vxpose.xlu0.b32.cont [11/16] 0.0, 128
    %567 = vxpose.xlu0.b32.cont [12/16] 0.0, 128
    %568 = vxpose.xlu0.b32.cont [13/16] 0.0, 128
    %569 = vxpose.xlu0.b32.cont [14/16] 0.0, 128
    %570 = vxpose.xlu0.b32.cont [15/16] 0.0, 128
    %571 = vxpose.xlu0.b32.end [16/16] 0.0, 128
    %v572 = vpop.trf.xlu0
    %v573 = vpop.trf.xlu0
    %v574 = vpop.trf.xlu0
    %v575 = vpop.trf.xlu0
    %v576 = vpop.trf.xlu0
    %v577 = vpop.trf.xlu0
    %v578 = vpop.trf.xlu0
    %v579 = vpop.trf.xlu0
    %v580 = vpop.trf.xlu0
    %v581 = vpop.trf.xlu0
    %v582 = vpop.trf.xlu0
    %v583 = vpop.trf.xlu0
    %v584 = vpop.trf.xlu0
    %v585 = vpop.trf.xlu0
    %v586 = vpop.trf.xlu0
    %v587 = vpop.trf.xlu0
    %588 = vxpose.xlu0.b32.start [1/16] %v241, 128
    %589 = vxpose.xlu0.b32.cont [2/16] 0.0, 128
    %590 = vxpose.xlu0.b32.cont [3/16] 0.0, 128
    %591 = vxpose.xlu0.b32.cont [4/16] 0.0, 128
    %592 = vxpose.xlu0.b32.cont [5/16] 0.0, 128
    %593 = vxpose.xlu0.b32.cont [6/16] 0.0, 128
    %594 = vxpose.xlu0.b32.cont [7/16] 0.0, 128
    %595 = vxpose.xlu0.b32.cont [8/16] 0.0, 128
    %596 = vxpose.xlu0.b32.cont [9/16] 0.0, 128
    %597 = vxpose.xlu0.b32.cont [10/16] 0.0, 128
    %598 = vxpose.xlu0.b32.cont [11/16] 0.0, 128
    %599 = vxpose.xlu0.b32.cont [12/16] 0.0, 128
    %600 = vxpose.xlu0.b32.cont [13/16] 0.0, 128
    %601 = vxpose.xlu0.b32.cont [14/16] 0.0, 128
    %602 = vxpose.xlu0.b32.cont [15/16] 0.0, 128
    %603 = vxpose.xlu0.b32.end [16/16] 0.0, 128
    %v604 = vpop.trf.xlu0
    %v605 = vpop.trf.xlu0
    %v606 = vpop.trf.xlu0
    %v607 = vpop.trf.xlu0
    %v608 = vpop.trf.xlu0
    %v609 = vpop.trf.xlu0
    %v610 = vpop.trf.xlu0
    %v611 = vpop.trf.xlu0
    %v612 = vpop.trf.xlu0
    %v613 = vpop.trf.xlu0
    %v614 = vpop.trf.xlu0
    %v615 = vpop.trf.xlu0
    %v616 = vpop.trf.xlu0
    %v617 = vpop.trf.xlu0
    %v618 = vpop.trf.xlu0
    %v619 = vpop.trf.xlu0
    %620 = vxpose.xlu0.b32.start [1/16] %v243, 128
    %621 = vxpose.xlu0.b32.cont [2/16] 0.0, 128
    %622 = vxpose.xlu0.b32.cont [3/16] 0.0, 128
    %623 = vxpose.xlu0.b32.cont [4/16] 0.0, 128
    %624 = vxpose.xlu0.b32.cont [5/16] 0.0, 128
    %625 = vxpose.xlu0.b32.cont [6/16] 0.0, 128
    %626 = vxpose.xlu0.b32.cont [7/16] 0.0, 128
    %627 = vxpose.xlu0.b32.cont [8/16] 0.0, 128
    %628 = vxpose.xlu0.b32.cont [9/16] 0.0, 128
    %629 = vxpose.xlu0.b32.cont [10/16] 0.0, 128
    %630 = vxpose.xlu0.b32.cont [11/16] 0.0, 128
    %631 = vxpose.xlu0.b32.cont [12/16] 0.0, 128
    %632 = vxpose.xlu0.b32.cont [13/16] 0.0, 128
    %633 = vxpose.xlu0.b32.cont [14/16] 0.0, 128
    %634 = vxpose.xlu0.b32.cont [15/16] 0.0, 128
    %635 = vxpose.xlu0.b32.end [16/16] 0.0, 128
    %v636 = vpop.trf.xlu0
    %v637 = vpop.trf.xlu0
    %v638 = vpop.trf.xlu0
    %v639 = vpop.trf.xlu0
    %v640 = vpop.trf.xlu0
    %v641 = vpop.trf.xlu0
    %v642 = vpop.trf.xlu0
    %v643 = vpop.trf.xlu0
    %v644 = vpop.trf.xlu0
    %v645 = vpop.trf.xlu0
    %v646 = vpop.trf.xlu0
    %v647 = vpop.trf.xlu0
    %v648 = vpop.trf.xlu0
    %v649 = vpop.trf.xlu0
    %v650 = vpop.trf.xlu0
    %v651 = vpop.trf.xlu0
    %652 = vxpose.xlu0.b32.start [1/16] %v245, 128
    %653 = vxpose.xlu0.b32.cont [2/16] 0.0, 128
    %654 = vxpose.xlu0.b32.cont [3/16] 0.0, 128
    %655 = vxpose.xlu0.b32.cont [4/16] 0.0, 128
    %656 = vxpose.xlu0.b32.cont [5/16] 0.0, 128
    %657 = vxpose.xlu0.b32.cont [6/16] 0.0, 128
    %658 = vxpose.xlu0.b32.cont [7/16] 0.0, 128
    %659 = vxpose.xlu0.b32.cont [8/16] 0.0, 128
    %660 = vxpose.xlu0.b32.cont [9/16] 0.0, 128
    %661 = vxpose.xlu0.b32.cont [10/16] 0.0, 128
    %662 = vxpose.xlu0.b32.cont [11/16] 0.0, 128
    %663 = vxpose.xlu0.b32.cont [12/16] 0.0, 128
    %664 = vxpose.xlu0.b32.cont [13/16] 0.0, 128
    %665 = vxpose.xlu0.b32.cont [14/16] 0.0, 128
    %666 = vxpose.xlu0.b32.cont [15/16] 0.0, 128
    %667 = vxpose.xlu0.b32.end [16/16] 0.0, 128
    %v668 = vpop.trf.xlu0
    %v669 = vpop.trf.xlu0
    %v670 = vpop.trf.xlu0
    %v671 = vpop.trf.xlu0
    %v672 = vpop.trf.xlu0
    %v673 = vpop.trf.xlu0
    %v674 = vpop.trf.xlu0
    %v675 = vpop.trf.xlu0
    %v676 = vpop.trf.xlu0
    %v677 = vpop.trf.xlu0
    %v678 = vpop.trf.xlu0
    %v679 = vpop.trf.xlu0
    %v680 = vpop.trf.xlu0
    %v681 = vpop.trf.xlu0
    %v682 = vpop.trf.xlu0
    %v683 = vpop.trf.xlu0
    %684 = vxpose.xlu0.b32.start [1/16] %v247, 128
    %685 = vxpose.xlu0.b32.cont [2/16] 0.0, 128
    %686 = vxpose.xlu0.b32.cont [3/16] 0.0, 128
    %687 = vxpose.xlu0.b32.cont [4/16] 0.0, 128
    %688 = vxpose.xlu0.b32.cont [5/16] 0.0, 128
    %689 = vxpose.xlu0.b32.cont [6/16] 0.0, 128
    %690 = vxpose.xlu0.b32.cont [7/16] 0.0, 128
    %691 = vxpose.xlu0.b32.cont [8/16] 0.0, 128
    %692 = vxpose.xlu0.b32.cont [9/16] 0.0, 128
    %693 = vxpose.xlu0.b32.cont [10/16] 0.0, 128
    %694 = vxpose.xlu0.b32.cont [11/16] 0.0, 128
    %695 = vxpose.xlu0.b32.cont [12/16] 0.0, 128
    %696 = vxpose.xlu0.b32.cont [13/16] 0.0, 128
    %697 = vxpose.xlu0.b32.cont [14/16] 0.0, 128
    %698 = vxpose.xlu0.b32.cont [15/16] 0.0, 128
    %699 = vxpose.xlu0.b32.end [16/16] 0.0, 128
    %v700 = vpop.trf.xlu0
    %v701 = vpop.trf.xlu0
    %v702 = vpop.trf.xlu0
    %v703 = vpop.trf.xlu0
    %v704 = vpop.trf.xlu0
    %v705 = vpop.trf.xlu0
    %v706 = vpop.trf.xlu0
    %v707 = vpop.trf.xlu0
    %v708 = vpop.trf.xlu0
    %v709 = vpop.trf.xlu0
    %v710 = vpop.trf.xlu0
    %v711 = vpop.trf.xlu0
    %v712 = vpop.trf.xlu0
    %v713 = vpop.trf.xlu0
    %v714 = vpop.trf.xlu0
    %v715 = vpop.trf.xlu0
    %716 = vxpose.xlu0.b32.start [1/16] %v249, 128
    %717 = vxpose.xlu0.b32.cont [2/16] 0.0, 128
    %718 = vxpose.xlu0.b32.cont [3/16] 0.0, 128
    %719 = vxpose.xlu0.b32.cont [4/16] 0.0, 128
    %720 = vxpose.xlu0.b32.cont [5/16] 0.0, 128
    %721 = vxpose.xlu0.b32.cont [6/16] 0.0, 128
    %722 = vxpose.xlu0.b32.cont [7/16] 0.0, 128
    %723 = vxpose.xlu0.b32.cont [8/16] 0.0, 128
    %724 = vxpose.xlu0.b32.cont [9/16] 0.0, 128
    %725 = vxpose.xlu0.b32.cont [10/16] 0.0, 128
    %726 = vxpose.xlu0.b32.cont [11/16] 0.0, 128
    %727 = vxpose.xlu0.b32.cont [12/16] 0.0, 128
    %728 = vxpose.xlu0.b32.cont [13/16] 0.0, 128
    %729 = vxpose.xlu0.b32.cont [14/16] 0.0, 128
    %730 = vxpose.xlu0.b32.cont [15/16] 0.0, 128
    %731 = vxpose.xlu0.b32.end [16/16] 0.0, 128
    %v732 = vpop.trf.xlu0
    %v733 = vpop.trf.xlu0
    %v734 = vpop.trf.xlu0
    %v735 = vpop.trf.xlu0
    %v736 = vpop.trf.xlu0
    %v737 = vpop.trf.xlu0
    %v738 = vpop.trf.xlu0
    %v739 = vpop.trf.xlu0
    %v740 = vpop.trf.xlu0
    %v741 = vpop.trf.xlu0
    %v742 = vpop.trf.xlu0
    %v743 = vpop.trf.xlu0
    %v744 = vpop.trf.xlu0
    %v745 = vpop.trf.xlu0
    %v746 = vpop.trf.xlu0
    %v747 = vpop.trf.xlu0
    %748 = vxpose.xlu0.b32.start [1/16] %v251, 128
    %749 = vxpose.xlu0.b32.cont [2/16] 0.0, 128
    %750 = vxpose.xlu0.b32.cont [3/16] 0.0, 128
    %751 = vxpose.xlu0.b32.cont [4/16] 0.0, 128
    %752 = vxpose.xlu0.b32.cont [5/16] 0.0, 128
    %753 = vxpose.xlu0.b32.cont [6/16] 0.0, 128
    %754 = vxpose.xlu0.b32.cont [7/16] 0.0, 128
    %755 = vxpose.xlu0.b32.cont [8/16] 0.0, 128
    %756 = vxpose.xlu0.b32.cont [9/16] 0.0, 128
    %757 = vxpose.xlu0.b32.cont [10/16] 0.0, 128
    %758 = vxpose.xlu0.b32.cont [11/16] 0.0, 128
    %759 = vxpose.xlu0.b32.cont [12/16] 0.0, 128
    %760 = vxpose.xlu0.b32.cont [13/16] 0.0, 128
    %761 = vxpose.xlu0.b32.cont [14/16] 0.0, 128
    %762 = vxpose.xlu0.b32.cont [15/16] 0.0, 128
    %763 = vxpose.xlu0.b32.end [16/16] 0.0, 128
    %v764 = vpop.trf.xlu0
    %v765 = vpop.trf.xlu0
    %v766 = vpop.trf.xlu0
    %v767 = vpop.trf.xlu0
    %v768 = vpop.trf.xlu0
    %v769 = vpop.trf.xlu0
    %v770 = vpop.trf.xlu0
    %v771 = vpop.trf.xlu0
    %v772 = vpop.trf.xlu0
    %v773 = vpop.trf.xlu0
    %v774 = vpop.trf.xlu0
    %v775 = vpop.trf.xlu0
    %v776 = vpop.trf.xlu0
    %v777 = vpop.trf.xlu0
    %v778 = vpop.trf.xlu0
    %v779 = vpop.trf.xlu0
    %v780 = vld [vmem:[%s1] sm:$0xff]
    %v781 = vld [vmem:[%s1 + $0x8] sm:$0xff]
    %v784 = vrot.slane %v780, 1
    %v785 = vrot.slane %v780, 2
    %v786 = vrot.slane %v780, 3
    %v787 = vrot.slane %v780, 4
    %v788 = vrot.slane %v780, 5
    %v789 = vrot.slane %v780, 6
    %v790 = vrot.slane %v780, 7
    %v791 = vrot.slane %v781, 1
    %v792 = vrot.slane %v781, 2
    %v793 = vrot.slane %v781, 3
    %v794 = vrot.slane %v781, 4
    %v795 = vrot.slane %v781, 5
    %v796 = vrot.slane %v781, 6
    %v797 = vrot.slane %v781, 7
    %v798 = vperm.slane %v780, 0
    %v799 = vperm.slane %v784, 0
    %v800 = vperm.slane %v785, 0
    %v801 = vperm.slane %v786, 0
    %v802 = vperm.slane %v787, 0
    %v803 = vperm.slane %v788, 0
    %v804 = vperm.slane %v789, 0
    %v805 = vperm.slane %v790, 0
    %v806 = vperm.slane %v781, 0
    %v807 = vperm.slane %v791, 0
    %v808 = vperm.slane %v792, 0
    %v809 = vperm.slane %v793, 0
    %v810 = vperm.slane %v794, 0
    %v811 = vperm.slane %v795, 0
    %v812 = vperm.slane %v796, 0
    %v813 = vperm.slane %v797, 0
    %v830 = vadd.f32 %v284, %v798
    %v831 = vadd.f32 %v316, %v799
    %v832 = vadd.f32 %v348, %v800
    %v833 = vadd.f32 %v380, %v801
    %v834 = vadd.f32 %v412, %v802
    %v835 = vadd.f32 %v444, %v803
    %v836 = vadd.f32 %v476, %v804
    %v837 = vadd.f32 %v508, %v805
    %v838 = vadd.f32 %v540, %v806
    %v839 = vadd.f32 %v572, %v807
    %v840 = vadd.f32 %v604, %v808
    %v841 = vadd.f32 %v636, %v809
    %v842 = vadd.f32 %v668, %v810
    %v843 = vadd.f32 %v700, %v811
    %v844 = vadd.f32 %v732, %v812
    %v845 = vadd.f32 %v764, %v813
    %vm846 = vcmask 60416
    %v847 = vsel %vm846, %v830, -inf
    %848 = vmax.xlane.f32.xlu0 %v847
    %v849 = vpop.xlane.xlu0 %848
    %v850 = vsel %vm846, %v831, -inf
    %851 = vmax.xlane.f32.xlu0 %v850
    %v852 = vpop.xlane.xlu0 %851
    %v853 = vsel %vm846, %v832, -inf
    %854 = vmax.xlane.f32.xlu0 %v853
    %v855 = vpop.xlane.xlu0 %854
    %v856 = vsel %vm846, %v833, -inf
    %857 = vmax.xlane.f32.xlu0 %v856
    %v858 = vpop.xlane.xlu0 %857
    %v859 = vsel %vm846, %v834, -inf
    %860 = vmax.xlane.f32.xlu0 %v859
    %v861 = vpop.xlane.xlu0 %860
    %v862 = vsel %vm846, %v835, -inf
    %863 = vmax.xlane.f32.xlu0 %v862
    %v864 = vpop.xlane.xlu0 %863
    %v865 = vsel %vm846, %v836, -inf
    %866 = vmax.xlane.f32.xlu0 %v865
    %v867 = vpop.xlane.xlu0 %866
    %v868 = vsel %vm846, %v837, -inf
    %869 = vmax.xlane.f32.xlu0 %v868
    %v870 = vpop.xlane.xlu0 %869
    %v871 = vsel %vm846, %v838, -inf
    %872 = vmax.xlane.f32.xlu0 %v871
    %v873 = vpop.xlane.xlu0 %872
    %v874 = vsel %vm846, %v839, -inf
    %875 = vmax.xlane.f32.xlu0 %v874
    %v876 = vpop.xlane.xlu0 %875
    %v877 = vsel %vm846, %v840, -inf
    %878 = vmax.xlane.f32.xlu0 %v877
    %v879 = vpop.xlane.xlu0 %878
    %v880 = vsel %vm846, %v841, -inf
    %881 = vmax.xlane.f32.xlu0 %v880
    %v882 = vpop.xlane.xlu0 %881
    %v883 = vsel %vm846, %v842, -inf
    %884 = vmax.xlane.f32.xlu0 %v883
    %v885 = vpop.xlane.xlu0 %884
    %v886 = vsel %vm846, %v843, -inf
    %887 = vmax.xlane.f32.xlu0 %v886
    %v888 = vpop.xlane.xlu0 %887
    %v889 = vsel %vm846, %v844, -inf
    %890 = vmax.xlane.f32.xlu0 %v889
    %v891 = vpop.xlane.xlu0 %890
    %v892 = vsel %vm846, %v845, -inf
    %893 = vmax.xlane.f32.xlu0 %v892
    %v894 = vpop.xlane.xlu0 %893
    %v895 = vsub.f32 %v830, %v849
    %v896 = vsub.f32 %v831, %v852
    %v897 = vsub.f32 %v832, %v855
    %v898 = vsub.f32 %v833, %v858
    %v899 = vsub.f32 %v834, %v861
    %v900 = vsub.f32 %v835, %v864
    %v901 = vsub.f32 %v836, %v867
    %v902 = vsub.f32 %v837, %v870
    %v903 = vsub.f32 %v838, %v873
    %v904 = vsub.f32 %v839, %v876
    %v905 = vsub.f32 %v840, %v879
    %v906 = vsub.f32 %v841, %v882
    %v907 = vsub.f32 %v842, %v885
    %v908 = vsub.f32 %v843, %v888
    %v909 = vsub.f32 %v844, %v891
    %v910 = vsub.f32 %v845, %v894
    %v911 = vmul.f32 %v895, 1.442695
    %v912 = vpow.pop %v911
    %v913 = vmul.f32 %v896, 1.442695
    %v914 = vpow.pop %v913
    %v915 = vmul.f32 %v897, 1.442695
    %v916 = vpow.pop %v915
    %v917 = vmul.f32 %v898, 1.442695
    %v918 = vpow.pop %v917
    %v919 = vmul.f32 %v899, 1.442695
    %v920 = vpow.pop %v919
    %v921 = vmul.f32 %v900, 1.442695
    %v922 = vpow.pop %v921
    %v923 = vmul.f32 %v901, 1.442695
    %v924 = vpow.pop %v923
    %v925 = vmul.f32 %v902, 1.442695
    %v926 = vpow.pop %v925
    %v927 = vmul.f32 %v903, 1.442695
    %v928 = vpow.pop %v927
    %v929 = vmul.f32 %v904, 1.442695
    %v930 = vpow.pop %v929
    %v931 = vmul.f32 %v905, 1.442695
    %v932 = vpow.pop %v931
    %v933 = vmul.f32 %v906, 1.442695
    %v934 = vpow.pop %v933
    %v935 = vmul.f32 %v907, 1.442695
    %v936 = vpow.pop %v935
    %v937 = vmul.f32 %v908, 1.442695
    %v938 = vpow.pop %v937
    %v939 = vmul.f32 %v909, 1.442695
    %v940 = vpow.pop %v939
    %v941 = vmul.f32 %v910, 1.442695
    %v942 = vpow.pop %v941
    %v943 = vsel %vm846, %v912, 0.0
    %944 = vadd.xlane.f32.xlu0 %v943
    %v945 = vpop.xlane.xlu0 %944
    %v946 = vsel %vm846, %v914, 0.0
    %947 = vadd.xlane.f32.xlu0 %v946
    %v948 = vpop.xlane.xlu0 %947
    %v949 = vsel %vm846, %v916, 0.0
    %950 = vadd.xlane.f32.xlu0 %v949
    %v951 = vpop.xlane.xlu0 %950
    %v952 = vsel %vm846, %v918, 0.0
    %953 = vadd.xlane.f32.xlu0 %v952
    %v954 = vpop.xlane.xlu0 %953
    %v955 = vsel %vm846, %v920, 0.0
    %956 = vadd.xlane.f32.xlu0 %v955
    %v957 = vpop.xlane.xlu0 %956
    %v958 = vsel %vm846, %v922, 0.0
    %959 = vadd.xlane.f32.xlu0 %v958
    %v960 = vpop.xlane.xlu0 %959
    %v961 = vsel %vm846, %v924, 0.0
    %962 = vadd.xlane.f32.xlu0 %v961
    %v963 = vpop.xlane.xlu0 %962
    %v964 = vsel %vm846, %v926, 0.0
    %965 = vadd.xlane.f32.xlu0 %v964
    %v966 = vpop.xlane.xlu0 %965
    %v967 = vsel %vm846, %v928, 0.0
    %968 = vadd.xlane.f32.xlu0 %v967
    %v969 = vpop.xlane.xlu0 %968
    %v970 = vsel %vm846, %v930, 0.0
    %971 = vadd.xlane.f32.xlu0 %v970
    %v972 = vpop.xlane.xlu0 %971
    %v973 = vsel %vm846, %v932, 0.0
    %974 = vadd.xlane.f32.xlu0 %v973
    %v975 = vpop.xlane.xlu0 %974
    %v976 = vsel %vm846, %v934, 0.0
    %977 = vadd.xlane.f32.xlu0 %v976
    %v978 = vpop.xlane.xlu0 %977
    %v979 = vsel %vm846, %v936, 0.0
    %980 = vadd.xlane.f32.xlu0 %v979
    %v981 = vpop.xlane.xlu0 %980
    %v982 = vsel %vm846, %v938, 0.0
    %983 = vadd.xlane.f32.xlu0 %v982
    %v984 = vpop.xlane.xlu0 %983
    %v985 = vsel %vm846, %v940, 0.0
    %986 = vadd.xlane.f32.xlu0 %v985
    %v987 = vpop.xlane.xlu0 %986
    %v988 = vsel %vm846, %v942, 0.0
    %989 = vadd.xlane.f32.xlu0 %v988
    %v990 = vpop.xlane.xlu0 %989
    %v991 = vrcp.pop %v945
    %v992 = vrcp.pop %v948
    %v993 = vrcp.pop %v951
    %v994 = vrcp.pop %v954
    %v995 = vrcp.pop %v957
    %v996 = vrcp.pop %v960
    %v997 = vrcp.pop %v963
    %v998 = vrcp.pop %v966
    %v999 = vrcp.pop %v969
    %v1000 = vrcp.pop %v972
    %v1001 = vrcp.pop %v975
    %v1002 = vrcp.pop %v978
    %v1003 = vrcp.pop %v981
    %v1004 = vrcp.pop %v984
    %v1005 = vrcp.pop %v987
    %v1006 = vrcp.pop %v990
    %v1007 = vmul.f32 %v912, %v991
    %v1008 = vmul.f32 %v914, %v992
    %v1009 = vmul.f32 %v916, %v993
    %v1010 = vmul.f32 %v918, %v994
    %v1011 = vmul.f32 %v920, %v995
    %v1012 = vmul.f32 %v922, %v996
    %v1013 = vmul.f32 %v924, %v997
    %v1014 = vmul.f32 %v926, %v998
    %v1015 = vmul.f32 %v928, %v999
    %v1016 = vmul.f32 %v930, %v1000
    %v1017 = vmul.f32 %v932, %v1001
    %v1018 = vmul.f32 %v934, %v1002
    %v1019 = vmul.f32 %v936, %v1003
    %v1020 = vmul.f32 %v938, %v1004
    %v1021 = vmul.f32 %v940, %v1005
    %v1022 = vmul.f32 %v942, %v1006
    %v1023 = vpack.c.bf16 %v1007, %v1007
    %v1024 = vpack.c.bf16 %v1008, %v1008
    %v1025 = vpack.c.bf16 %v1009, %v1009
    %v1026 = vpack.c.bf16 %v1010, %v1010
    %v1027 = vpack.c.bf16 %v1011, %v1011
    %v1028 = vpack.c.bf16 %v1012, %v1012
    %v1029 = vpack.c.bf16 %v1013, %v1013
    %v1030 = vpack.c.bf16 %v1014, %v1014
    %v1031 = vpack.c.bf16 %v1015, %v1015
    %v1032 = vpack.c.bf16 %v1016, %v1016
    %v1033 = vpack.c.bf16 %v1017, %v1017
    %v1034 = vpack.c.bf16 %v1018, %v1018
    %v1035 = vpack.c.bf16 %v1019, %v1019
    %v1036 = vpack.c.bf16 %v1020, %v1020
    %v1037 = vpack.c.bf16 %v1021, %v1021
    %v1038 = vpack.c.bf16 %v1022, %v1022
    %vm1039 = vcmask 64512
    %v1041 = vsel %vm1039, %v1023, 0
    %vm1043 = vcmask 1043456
    %v1045 = vsel %vm1043, %v188, 0
    %1047 = vmatpush.bf16.msra.mxu0 0
    %1048 = vmatpush.bf16.msra.mxu0 0
    %1049 = vmatpush.bf16.msra.mxu0 0
    %1050 = vmatpush.bf16.msra.mxu0 0
    %1051 = vmatpush.bf16.msra.mxu0 0
    %1052 = vmatpush.bf16.msra.mxu0 0
    %1053 = vmatpush.bf16.msra.mxu0 0
    %1054 = vmatpush.bf16.msra.mxu0 %v1045
    %1055 = vmatmul.bf16.gmra.mxu0 %v1041
    %v1056 = vpop.f32.mrf.mxu0
    %v1057 = vadd.f32 0.0, %v1056
    %v1058 = vpop.f32.mrf.mxu0
    %1059 = vdwg.mxu0
    %v1061 = vsel %vm1039, %v1024, 0
    %v1064 = vsel %vm1043, %v189, 0
    %1066 = vmatpush.bf16.msra.mxu0 0
    %1067 = vmatpush.bf16.msra.mxu0 0
    %1068 = vmatpush.bf16.msra.mxu0 0
    %1069 = vmatpush.bf16.msra.mxu0 0
    %1070 = vmatpush.bf16.msra.mxu0 0
    %1071 = vmatpush.bf16.msra.mxu0 0
    %1072 = vmatpush.bf16.msra.mxu0 0
    %1073 = vmatpush.bf16.msra.mxu0 %v1064
    %1074 = vmatmul.bf16.gmra.mxu0 %v1061
    %v1075 = vpop.f32.mrf.mxu0
    %v1076 = vadd.f32 0.0, %v1075
    %v1077 = vpop.f32.mrf.mxu0
    %1078 = vdwg.mxu0
    %v1080 = vsel %vm1039, %v1025, 0
    %v1083 = vsel %vm1043, %v190, 0
    %1085 = vmatpush.bf16.msra.mxu0 0
    %1086 = vmatpush.bf16.msra.mxu0 0
    %1087 = vmatpush.bf16.msra.mxu0 0
    %1088 = vmatpush.bf16.msra.mxu0 0
    %1089 = vmatpush.bf16.msra.mxu0 0
    %1090 = vmatpush.bf16.msra.mxu0 0
    %1091 = vmatpush.bf16.msra.mxu0 0
    %1092 = vmatpush.bf16.msra.mxu0 %v1083
    %1093 = vmatmul.bf16.gmra.mxu0 %v1080
    %v1094 = vpop.f32.mrf.mxu0
    %v1095 = vadd.f32 0.0, %v1094
    %v1096 = vpop.f32.mrf.mxu0
    %1097 = vdwg.mxu0
    %v1099 = vsel %vm1039, %v1026, 0
    %v1102 = vsel %vm1043, %v191, 0
    %1104 = vmatpush.bf16.msra.mxu0 0
    %1105 = vmatpush.bf16.msra.mxu0 0
    %1106 = vmatpush.bf16.msra.mxu0 0
    %1107 = vmatpush.bf16.msra.mxu0 0
    %1108 = vmatpush.bf16.msra.mxu0 0
    %1109 = vmatpush.bf16.msra.mxu0 0
    %1110 = vmatpush.bf16.msra.mxu0 0
    %1111 = vmatpush.bf16.msra.mxu0 %v1102
    %1112 = vmatmul.bf16.gmra.mxu0 %v1099
    %v1113 = vpop.f32.mrf.mxu0
    %v1114 = vadd.f32 0.0, %v1113
    %v1115 = vpop.f32.mrf.mxu0
    %1116 = vdwg.mxu0
    %v1118 = vsel %vm1039, %v1027, 0
    %v1121 = vsel %vm1043, %v192, 0
    %1123 = vmatpush.bf16.msra.mxu0 0
    %1124 = vmatpush.bf16.msra.mxu0 0
    %1125 = vmatpush.bf16.msra.mxu0 0
    %1126 = vmatpush.bf16.msra.mxu0 0
    %1127 = vmatpush.bf16.msra.mxu0 0
    %1128 = vmatpush.bf16.msra.mxu0 0
    %1129 = vmatpush.bf16.msra.mxu0 0
    %1130 = vmatpush.bf16.msra.mxu0 %v1121
    %1131 = vmatmul.bf16.gmra.mxu0 %v1118
    %v1132 = vpop.f32.mrf.mxu0
    %v1133 = vadd.f32 0.0, %v1132
    %v1134 = vpop.f32.mrf.mxu0
    %1135 = vdwg.mxu0
    %v1137 = vsel %vm1039, %v1028, 0
    %v1140 = vsel %vm1043, %v193, 0
    %1142 = vmatpush.bf16.msra.mxu0 0
    %1143 = vmatpush.bf16.msra.mxu0 0
    %1144 = vmatpush.bf16.msra.mxu0 0
    %1145 = vmatpush.bf16.msra.mxu0 0
    %1146 = vmatpush.bf16.msra.mxu0 0
    %1147 = vmatpush.bf16.msra.mxu0 0
    %1148 = vmatpush.bf16.msra.mxu0 0
    %1149 = vmatpush.bf16.msra.mxu0 %v1140
    %1150 = vmatmul.bf16.gmra.mxu0 %v1137
    %v1151 = vpop.f32.mrf.mxu0
    %v1152 = vadd.f32 0.0, %v1151
    %v1153 = vpop.f32.mrf.mxu0
    %1154 = vdwg.mxu0
    %v1156 = vsel %vm1039, %v1029, 0
    %v1159 = vsel %vm1043, %v194, 0
    %1161 = vmatpush.bf16.msra.mxu0 0
    %1162 = vmatpush.bf16.msra.mxu0 0
    %1163 = vmatpush.bf16.msra.mxu0 0
    %1164 = vmatpush.bf16.msra.mxu0 0
    %1165 = vmatpush.bf16.msra.mxu0 0
    %1166 = vmatpush.bf16.msra.mxu0 0
    %1167 = vmatpush.bf16.msra.mxu0 0
    %1168 = vmatpush.bf16.msra.mxu0 %v1159
    %1169 = vmatmul.bf16.gmra.mxu0 %v1156
    %v1170 = vpop.f32.mrf.mxu0
    %v1171 = vadd.f32 0.0, %v1170
    %v1172 = vpop.f32.mrf.mxu0
    %1173 = vdwg.mxu0
    %v1175 = vsel %vm1039, %v1030, 0
    %v1178 = vsel %vm1043, %v195, 0
    %1180 = vmatpush.bf16.msra.mxu0 0
    %1181 = vmatpush.bf16.msra.mxu0 0
    %1182 = vmatpush.bf16.msra.mxu0 0
    %1183 = vmatpush.bf16.msra.mxu0 0
    %1184 = vmatpush.bf16.msra.mxu0 0
    %1185 = vmatpush.bf16.msra.mxu0 0
    %1186 = vmatpush.bf16.msra.mxu0 0
    %1187 = vmatpush.bf16.msra.mxu0 %v1178
    %1188 = vmatmul.bf16.gmra.mxu0 %v1175
    %v1189 = vpop.f32.mrf.mxu0
    %v1190 = vadd.f32 0.0, %v1189
    %v1191 = vpop.f32.mrf.mxu0
    %1192 = vdwg.mxu0
    %v1194 = vsel %vm1039, %v1031, 0
    %v1197 = vsel %vm1043, %v196, 0
    %1199 = vmatpush.bf16.msra.mxu0 0
    %1200 = vmatpush.bf16.msra.mxu0 0
    %1201 = vmatpush.bf16.msra.mxu0 0
    %1202 = vmatpush.bf16.msra.mxu0 0
    %1203 = vmatpush.bf16.msra.mxu0 0
    %1204 = vmatpush.bf16.msra.mxu0 0
    %1205 = vmatpush.bf16.msra.mxu0 0
    %1206 = vmatpush.bf16.msra.mxu0 %v1197
    %1207 = vmatmul.bf16.gmra.mxu0 %v1194
    %v1208 = vpop.f32.mrf.mxu0
    %v1209 = vadd.f32 0.0, %v1208
    %v1210 = vpop.f32.mrf.mxu0
    %1211 = vdwg.mxu0
    %v1213 = vsel %vm1039, %v1032, 0
    %v1216 = vsel %vm1043, %v197, 0
    %1218 = vmatpush.bf16.msra.mxu0 0
    %1219 = vmatpush.bf16.msra.mxu0 0
    %1220 = vmatpush.bf16.msra.mxu0 0
    %1221 = vmatpush.bf16.msra.mxu0 0
    %1222 = vmatpush.bf16.msra.mxu0 0
    %1223 = vmatpush.bf16.msra.mxu0 0
    %1224 = vmatpush.bf16.msra.mxu0 0
    %1225 = vmatpush.bf16.msra.mxu0 %v1216
    %1226 = vmatmul.bf16.gmra.mxu0 %v1213
    %v1227 = vpop.f32.mrf.mxu0
    %v1228 = vadd.f32 0.0, %v1227
    %v1229 = vpop.f32.mrf.mxu0
    %1230 = vdwg.mxu0
    %v1232 = vsel %vm1039, %v1033, 0
    %v1235 = vsel %vm1043, %v198, 0
    %1237 = vmatpush.bf16.msra.mxu0 0
    %1238 = vmatpush.bf16.msra.mxu0 0
    %1239 = vmatpush.bf16.msra.mxu0 0
    %1240 = vmatpush.bf16.msra.mxu0 0
    %1241 = vmatpush.bf16.msra.mxu0 0
    %1242 = vmatpush.bf16.msra.mxu0 0
    %1243 = vmatpush.bf16.msra.mxu0 0
    %1244 = vmatpush.bf16.msra.mxu0 %v1235
    %1245 = vmatmul.bf16.gmra.mxu0 %v1232
    %v1246 = vpop.f32.mrf.mxu0
    %v1247 = vadd.f32 0.0, %v1246
    %v1248 = vpop.f32.mrf.mxu0
    %1249 = vdwg.mxu0
    %v1251 = vsel %vm1039, %v1034, 0
    %v1254 = vsel %vm1043, %v199, 0
    %1256 = vmatpush.bf16.msra.mxu0 0
    %1257 = vmatpush.bf16.msra.mxu0 0
    %1258 = vmatpush.bf16.msra.mxu0 0
    %1259 = vmatpush.bf16.msra.mxu0 0
    %1260 = vmatpush.bf16.msra.mxu0 0
    %1261 = vmatpush.bf16.msra.mxu0 0
    %1262 = vmatpush.bf16.msra.mxu0 0
    %1263 = vmatpush.bf16.msra.mxu0 %v1254
    %1264 = vmatmul.bf16.gmra.mxu0 %v1251
    %v1265 = vpop.f32.mrf.mxu0
    %v1266 = vadd.f32 0.0, %v1265
    %v1267 = vpop.f32.mrf.mxu0
    %1268 = vdwg.mxu0
    %v1270 = vsel %vm1039, %v1035, 0
    %v1273 = vsel %vm1043, %v200, 0
    %1275 = vmatpush.bf16.msra.mxu0 0
    %1276 = vmatpush.bf16.msra.mxu0 0
    %1277 = vmatpush.bf16.msra.mxu0 0
    %1278 = vmatpush.bf16.msra.mxu0 0
    %1279 = vmatpush.bf16.msra.mxu0 0
    %1280 = vmatpush.bf16.msra.mxu0 0
    %1281 = vmatpush.bf16.msra.mxu0 0
    %1282 = vmatpush.bf16.msra.mxu0 %v1273
    %1283 = vmatmul.bf16.gmra.mxu0 %v1270
    %v1284 = vpop.f32.mrf.mxu0
    %v1285 = vadd.f32 0.0, %v1284
    %v1286 = vpop.f32.mrf.mxu0
    %1287 = vdwg.mxu0
    %v1289 = vsel %vm1039, %v1036, 0
    %v1292 = vsel %vm1043, %v201, 0
    %1294 = vmatpush.bf16.msra.mxu0 0
    %1295 = vmatpush.bf16.msra.mxu0 0
    %1296 = vmatpush.bf16.msra.mxu0 0
    %1297 = vmatpush.bf16.msra.mxu0 0
    %1298 = vmatpush.bf16.msra.mxu0 0
    %1299 = vmatpush.bf16.msra.mxu0 0
    %1300 = vmatpush.bf16.msra.mxu0 0
    %1301 = vmatpush.bf16.msra.mxu0 %v1292
    %1302 = vmatmul.bf16.gmra.mxu0 %v1289
    %v1303 = vpop.f32.mrf.mxu0
    %v1304 = vadd.f32 0.0, %v1303
    %v1305 = vpop.f32.mrf.mxu0
    %1306 = vdwg.mxu0
    %v1308 = vsel %vm1039, %v1037, 0
    %v1311 = vsel %vm1043, %v202, 0
    %1313 = vmatpush.bf16.msra.mxu0 0
    %1314 = vmatpush.bf16.msra.mxu0 0
    %1315 = vmatpush.bf16.msra.mxu0 0
    %1316 = vmatpush.bf16.msra.mxu0 0
    %1317 = vmatpush.bf16.msra.mxu0 0
    %1318 = vmatpush.bf16.msra.mxu0 0
    %1319 = vmatpush.bf16.msra.mxu0 0
    %1320 = vmatpush.bf16.msra.mxu0 %v1311
    %1321 = vmatmul.bf16.gmra.mxu0 %v1308
    %v1322 = vpop.f32.mrf.mxu0
    %v1323 = vadd.f32 0.0, %v1322
    %v1324 = vpop.f32.mrf.mxu0
    %1325 = vdwg.mxu0
    %v1327 = vsel %vm1039, %v1038, 0
    %v1330 = vsel %vm1043, %v203, 0
    %1332 = vmatpush.bf16.msra.mxu0 0
    %1333 = vmatpush.bf16.msra.mxu0 0
    %1334 = vmatpush.bf16.msra.mxu0 0
    %1335 = vmatpush.bf16.msra.mxu0 0
    %1336 = vmatpush.bf16.msra.mxu0 0
    %1337 = vmatpush.bf16.msra.mxu0 0
    %1338 = vmatpush.bf16.msra.mxu0 0
    %1339 = vmatpush.bf16.msra.mxu0 %v1330
    %1340 = vmatmul.bf16.gmra.mxu0 %v1327
    %v1341 = vpop.f32.mrf.mxu0
    %v1342 = vadd.f32 0.0, %v1341
    %v1343 = vpop.f32.mrf.mxu0
    %1344 = vdwg.mxu0
    %v1345 = vld [vmem:[%s4] sm:$0xf]
    %v1346 = vmul.f32 %v1057, %v1345
    %v1347 = vmul.f32 %v1076, %v1345
    %v1348 = vmul.f32 %v1095, %v1345
    %v1349 = vmul.f32 %v1114, %v1345
    %v1350 = vmul.f32 %v1133, %v1345
    %v1351 = vmul.f32 %v1152, %v1345
    %v1352 = vmul.f32 %v1171, %v1345
    %v1353 = vmul.f32 %v1190, %v1345
    %v1354 = vmul.f32 %v1209, %v1345
    %v1355 = vmul.f32 %v1228, %v1345
    %v1356 = vmul.f32 %v1247, %v1345
    %v1357 = vmul.f32 %v1266, %v1345
    %v1358 = vmul.f32 %v1285, %v1345
    %v1359 = vmul.f32 %v1304, %v1345
    %v1360 = vmul.f32 %v1323, %v1345
    %v1361 = vmul.f32 %v1342, %v1345
    %vm1362 = vcmask 257024
    %v1363 = vsel %vm1362, %v1346, 0.0
    %v1364 = vrot.slane %v1363, 4
    %v1365 = vadd.f32 %v1363, %v1364
    %v1366 = vrot.slane %v1365, 2
    %v1367 = vadd.f32 %v1365, %v1366
    %v1368 = vrot.slane %v1367, 1
    %v1369 = vadd.f32 %v1367, %v1368
    %v1370 = vsel %vm1362, %v1347, 0.0
    %v1371 = vrot.slane %v1370, 4
    %v1372 = vadd.f32 %v1370, %v1371
    %v1373 = vrot.slane %v1372, 2
    %v1374 = vadd.f32 %v1372, %v1373
    %v1375 = vrot.slane %v1374, 1
    %v1376 = vadd.f32 %v1374, %v1375
    %v1377 = vsel %vm1362, %v1348, 0.0
    %v1378 = vrot.slane %v1377, 4
    %v1379 = vadd.f32 %v1377, %v1378
    %v1380 = vrot.slane %v1379, 2
    %v1381 = vadd.f32 %v1379, %v1380
    %v1382 = vrot.slane %v1381, 1
    %v1383 = vadd.f32 %v1381, %v1382
    %v1384 = vsel %vm1362, %v1349, 0.0
    %v1385 = vrot.slane %v1384, 4
    %v1386 = vadd.f32 %v1384, %v1385
    %v1387 = vrot.slane %v1386, 2
    %v1388 = vadd.f32 %v1386, %v1387
    %v1389 = vrot.slane %v1388, 1
    %v1390 = vadd.f32 %v1388, %v1389
    %v1391 = vsel %vm1362, %v1350, 0.0
    %v1392 = vrot.slane %v1391, 4
    %v1393 = vadd.f32 %v1391, %v1392
    %v1394 = vrot.slane %v1393, 2
    %v1395 = vadd.f32 %v1393, %v1394
    %v1396 = vrot.slane %v1395, 1
    %v1397 = vadd.f32 %v1395, %v1396
    %v1398 = vsel %vm1362, %v1351, 0.0
    %v1399 = vrot.slane %v1398, 4
    %v1400 = vadd.f32 %v1398, %v1399
    %v1401 = vrot.slane %v1400, 2
    %v1402 = vadd.f32 %v1400, %v1401
    %v1403 = vrot.slane %v1402, 1
    %v1404 = vadd.f32 %v1402, %v1403
    %v1405 = vsel %vm1362, %v1352, 0.0
    %v1406 = vrot.slane %v1405, 4
    %v1407 = vadd.f32 %v1405, %v1406
    %v1408 = vrot.slane %v1407, 2
    %v1409 = vadd.f32 %v1407, %v1408
    %v1410 = vrot.slane %v1409, 1
    %v1411 = vadd.f32 %v1409, %v1410
    %v1412 = vsel %vm1362, %v1353, 0.0
    %v1413 = vrot.slane %v1412, 4
    %v1414 = vadd.f32 %v1412, %v1413
    %v1415 = vrot.slane %v1414, 2
    %v1416 = vadd.f32 %v1414, %v1415
    %v1417 = vrot.slane %v1416, 1
    %v1418 = vadd.f32 %v1416, %v1417
    %v1419 = vsel %vm1362, %v1354, 0.0
    %v1420 = vrot.slane %v1419, 4
    %v1421 = vadd.f32 %v1419, %v1420
    %v1422 = vrot.slane %v1421, 2
    %v1423 = vadd.f32 %v1421, %v1422
    %v1424 = vrot.slane %v1423, 1
    %v1425 = vadd.f32 %v1423, %v1424
    %v1426 = vsel %vm1362, %v1355, 0.0
    %v1427 = vrot.slane %v1426, 4
    %v1428 = vadd.f32 %v1426, %v1427
    %v1429 = vrot.slane %v1428, 2
    %v1430 = vadd.f32 %v1428, %v1429
    %v1431 = vrot.slane %v1430, 1
    %v1432 = vadd.f32 %v1430, %v1431
    %v1433 = vsel %vm1362, %v1356, 0.0
    %v1434 = vrot.slane %v1433, 4
    %v1435 = vadd.f32 %v1433, %v1434
    %v1436 = vrot.slane %v1435, 2
    %v1437 = vadd.f32 %v1435, %v1436
    %v1438 = vrot.slane %v1437, 1
    %v1439 = vadd.f32 %v1437, %v1438
    %v1440 = vsel %vm1362, %v1357, 0.0
    %v1441 = vrot.slane %v1440, 4
    %v1442 = vadd.f32 %v1440, %v1441
    %v1443 = vrot.slane %v1442, 2
    %v1444 = vadd.f32 %v1442, %v1443
    %v1445 = vrot.slane %v1444, 1
    %v1446 = vadd.f32 %v1444, %v1445
    %v1447 = vsel %vm1362, %v1358, 0.0
    %v1448 = vrot.slane %v1447, 4
    %v1449 = vadd.f32 %v1447, %v1448
    %v1450 = vrot.slane %v1449, 2
    %v1451 = vadd.f32 %v1449, %v1450
    %v1452 = vrot.slane %v1451, 1
    %v1453 = vadd.f32 %v1451, %v1452
    %v1454 = vsel %vm1362, %v1359, 0.0
    %v1455 = vrot.slane %v1454, 4
    %v1456 = vadd.f32 %v1454, %v1455
    %v1457 = vrot.slane %v1456, 2
    %v1458 = vadd.f32 %v1456, %v1457
    %v1459 = vrot.slane %v1458, 1
    %v1460 = vadd.f32 %v1458, %v1459
    %v1461 = vsel %vm1362, %v1360, 0.0
    %v1462 = vrot.slane %v1461, 4
    %v1463 = vadd.f32 %v1461, %v1462
    %v1464 = vrot.slane %v1463, 2
    %v1465 = vadd.f32 %v1463, %v1464
    %v1466 = vrot.slane %v1465, 1
    %v1467 = vadd.f32 %v1465, %v1466
    %v1468 = vsel %vm1362, %v1361, 0.0
    %v1469 = vrot.slane %v1468, 4
    %v1470 = vadd.f32 %v1468, %v1469
    %v1471 = vrot.slane %v1470, 2
    %v1472 = vadd.f32 %v1470, %v1471
    %v1473 = vrot.slane %v1472, 1
    %v1474 = vadd.f32 %v1472, %v1473
    %vm1491 = vcmask 1041409
    %v1492 = vsel %vm1491, %v1376, %v1369
    %vm1493 = vcmask 1042434
    %v1494 = vsel %vm1493, %v1383, %v1492
    %vm1495 = vcmask 1043459
    %v1496 = vsel %vm1495, %v1390, %v1494
    %vm1497 = vcmask 1044484
    %v1498 = vsel %vm1497, %v1397, %v1496
    %vm1499 = vcmask 1045509
    %v1500 = vsel %vm1499, %v1404, %v1498
    %vm1501 = vcmask 1046534
    %v1502 = vsel %vm1501, %v1411, %v1500
    %vm1503 = vcmask 1047559
    %v1504 = vsel %vm1503, %v1418, %v1502
    %v1505 = vsel %vm1491, %v1432, %v1425
    %v1506 = vsel %vm1493, %v1439, %v1505
    %v1507 = vsel %vm1495, %v1446, %v1506
    %v1508 = vsel %vm1497, %v1453, %v1507
    %v1509 = vsel %vm1499, %v1460, %v1508
    %v1510 = vsel %vm1501, %v1467, %v1509
    %v1511 = vsel %vm1503, %v1474, %v1510
    %1514 = vst.msk [vmem:[#allocation5] sm:$0xff] %vm114, %v1504
    %1515 = vst.msk [vmem:[#allocation5 + $0x8] sm:$0xff] %vm114, %v1511
    // Predicated region
    $region26: #{tpu_custom_call.1} parent=1 // pred_check
      _
    $region27: #{tpu_custom_call.1} parent=1 // pred_check_branch
      %1517 = sbr.rel (0) target = $region29
    $region28: #{tpu_custom_call.1} parent=1 // pred_region
      %1519 = vsyncadd [#allocation4], 0
      %s1520 = sshll.u32 [#allocation5], 4
      %s1521 = int_to_ptr.vmem [resolvable:$true] %s1520
      %s1522 = sshll.u32 %s5, 4
      %s1523 = int_to_ptr.hbm [resolvable:$true] %s1522
      %1528 = dma.vmem_to_hbm [thread:$0]  %s1521, 256, %s1523, [#allocation4], 128, 128, 8
    $region29: #{tpu_custom_call.1} parent=1 // pred_fallthru
      _
    // Predicated region
    $region30: #{tpu_custom_call.1} parent=1 // pred_check
      _
    $region31: #{tpu_custom_call.1} parent=1 // pred_check_branch
      %1530 = sbr.rel (0) target = $region33
    $region32: #{tpu_custom_call.1} parent=1 // pred_region
      %1532 = dma.done [#allocation4], 256
    $region33: #{tpu_custom_call.1} parent=1 // pred_fallthru
      _
    %1533 = vsyncpa [#allocation3], 1
    %1534 = vsyncpa [#allocation4], 1

</llo_original>
